<compile_context>
chip_gen: v7x
topology: tpu7x:2x2x1
jax: 0.10.0
libtpu: 0.0.40
codegen_flags: <defaults>
</compile_context>

<pallas_src>
import math

import jax
import jax.numpy as jnp
from jax import lax
from jax.experimental import pallas as pl
from jax.experimental.pallas import tpu as pltpu
from jax.scipy.special import erf

# Small synthetic RoBERTa config (end_layer - start_layer == NUM_LAYERS).
BATCH = 2
SEQ = 8
HIDDEN = 32
NUM_HEADS = 4
HEAD_DIM = HIDDEN // NUM_HEADS
INTERMEDIATE = 4 * HIDDEN
NUM_LAYERS = 2
LN_EPS = 1e-5

# For production sizes (H>=768, I=3072) cast the stacked weights to
# jnp.bfloat16 here (activations are cast at the dot, accumulation stays f32
# via preferred_element_type): ~3x fewer MXU passes and half the weight bytes
# on v5e/v6e/v7x.  Kept f32 at this toy size: the MXU is idle here and f32
# preserves the full 1e-2 validation slack (per the review's tolerance note).
WEIGHT_DTYPE = jnp.float32


def _gelu_tanh(x):
    # tanh-form GELU (EUP); |diff| vs the exact erf GELU is < ~1e-3 per element.
    c = math.sqrt(2.0 / math.pi)
    return 0.5 * x * (1.0 + jnp.tanh(c * (x + 0.044715 * x * x * x)))


def _gelu_exact(x):
    # HF RoBERTa intermediate activation (exact erf GELU) -- host reference only.
    return 0.5 * x * (1.0 + erf(x / math.sqrt(2.0)))


def _layer_norm_fused(x, gamma, beta):
    # var = E[x^2] - mu^2: the two cross-lane reductions are independent and
    # can issue back-to-back on the XLU (vs. the serial mu -> (x-mu)^2 chain).
    mu = jnp.mean(x, axis=-1, keepdims=True)
    ms = jnp.mean(x * x, axis=-1, keepdims=True)
    var = ms - mu * mu
    return (x - mu) * lax.rsqrt(var + LN_EPS) * gamma + beta


def _layer_norm_ref(x, gamma, beta):
    mu = jnp.mean(x, axis=-1, keepdims=True)
    var = jnp.mean((x - mu) ** 2, axis=-1, keepdims=True)
    return (x - mu) * lax.rsqrt(var + LN_EPS) * gamma + beta


def _mm(x, w):
    # MXU matmul; activations cast to the weight dtype (bf16 path for
    # production sizes), accumulation in f32.
    return jnp.dot(x.astype(w.dtype), w, preferred_element_type=jnp.float32)


def _make_encoder_kernel(num_layers):
    scale = 1.0 / math.sqrt(HEAD_DIM)

    def kernel(h_ref, bias_ref, hmask_ref, bones_ref,
               wqkv_ref, wo_ref, wi_ref, wo2_ref, vec_ref, out_ref):
        """One grid step == the full layer stack over one batch row (S, H)."""
        h = h_ref[0]                    # (S, H) hidden states for this batch
        key_bias = bias_ref[0]          # (1, NH*S) additive key-padding bias
        head_mask = hmask_ref[...]      # (NH*S, H): 1 where col-block head == feature head
        block_ones = bones_ref[...]     # (NH*S, NH*S): 1 within a head block

        for l in range(num_layers):     # static unroll; all weights VMEM-resident
            wqkv = wqkv_ref[l]          # (H, 3H) fused Q|K|V projection
            wo = wo_ref[l]              # (H, H)
            wi = wi_ref[l]              # (H, I)
            wo2 = wo2_ref[l]            # (I, H)
            vec = vec_ref[l]            # (8, I) packed bias / LayerNorm vector slab
            bqkv = vec[0:1, :3 * HIDDEN]
            bo = vec[1:2, :HIDDEN]
            g1 = vec[2:3, :HIDDEN]
            be1 = vec[3:4, :HIDDEN]
            bi = vec[4:5, :INTERMEDIATE]
            bo2 = vec[5:6, :HIDDEN]
            g2 = vec[6:7, :HIDDEN]
            be2 = vec[7:8, :HIDDEN]

            # --- Self-attention ------------------------------------------
            qkv = _mm(h, wqkv) + bqkv                       # one MXU pass, (S, 3H)
            q = qkv[:, :HIDDEN] * scale                     # softmax scale folded into q
            k = qkv[:, HIDDEN:2 * HIDDEN]
            v = qkv[:, 2 * HIDDEN:3 * HIDDEN]

            # Block-diagonal head layout: row n*S + j of k_rep / v_rep is
            # key/value j restricted to head n's feature slice.
            k_rep = jnp.tile(k, (NUM_HEADS, 1)) * head_mask   # (NH*S, H)
            v_rep = jnp.tile(v, (NUM_HEADS, 1)) * head_mask   # (NH*S, H)

            # scores[i, n*S + j] = q_n[i] . k_n[j]   (contract last axes, no .T)
            scores = lax.dot_general(q, k_rep, (((1,), (1,)), ((), ())),
                                     preferred_element_type=jnp.float32)
            # NOTE: the pad bias must stay FINITE (-10000, exactly as the
            # PyTorch module builds it).  With -inf the row max could become
            # -inf and exp(scores - m) would produce NaNs (inf - inf).
            scores = scores + key_bias                        # (S, NH*S)

            # Per-head softmax; the global row max is a valid per-block shift.
            m = jnp.max(scores, axis=-1, keepdims=True)
            e = jnp.exp(scores - m)
            denom = jnp.dot(e, block_ones, preferred_element_type=jnp.float32)
            probs = e * pl.reciprocal(denom, approx=True)     # EUP vrcp

            # Apply V and merge heads in the same lane-dense matmul.
            ctx = jnp.dot(probs, v_rep, preferred_element_type=jnp.float32)  # (S, H)

            attn = _mm(ctx, wo) + bo
            h1 = _layer_norm_fused(attn + h, g1, be1)

            # --- Feed-forward --------------------------------------------
            inter = _gelu_tanh(_mm(h1, wi) + bi)
            h = _layer_norm_fused(_mm(inter, wo2) + bo2 + h1, g2, be2)

        out_ref[0] = h.astype(out_ref.dtype)   # single output store per block

    return kernel


def _attention_constants(attention_mask, dtype):
    """Host-side constants for the per-batch, block-diagonal head layout."""
    B, S = attention_mask.shape
    NS = NUM_HEADS * S
    # Key-side additive padding bias, exactly as the PyTorch module computes it.
    key_bias = (1.0 - attention_mask.astype(dtype)) * -10000.0          # (B, S)
    bias_slab = jnp.tile(key_bias, (1, NUM_HEADS))[:, None, :]           # (B, 1, NH*S)
    col_head = jnp.arange(NS) // S
    dim_head = jnp.arange(HIDDEN) // HEAD_DIM
    head_mask = (col_head[:, None] == dim_head[None, :]).astype(dtype)   # (NS, H)
    block_ones = (col_head[:, None] == col_head[None, :]).astype(dtype)  # (NS, NS)
    # TODO(synk): block_ones is O((NH*S)^2); for production S / NH, tile the
    # KV dimension flash-style and compute the per-head denominator with a
    # per-block reduce (and build the mask from broadcasted_iota in-kernel)
    # instead of streaming these constants.
    return bias_slab, head_mask, block_ones


def _stack_layer_params(layer_params):
    """Stack per-layer weights on a leading L axis; fuse QKV; pack vectors."""
    wqkv = jnp.stack([jnp.concatenate([p["wq"], p["wk"], p["wv"]], axis=1)
                      for p in layer_params]).astype(WEIGHT_DTYPE)   # (L, H, 3H)
    wo = jnp.stack([p["wo"] for p in layer_params]).astype(WEIGHT_DTYPE)    # (L, H, H)
    wi = jnp.stack([p["wi"] for p in layer_params]).astype(WEIGHT_DTYPE)    # (L, H, I)
    wo2 = jnp.stack([p["wo2"] for p in layer_params]).astype(WEIGHT_DTYPE)  # (L, I, H)

    assert INTERMEDIATE >= 3 * HIDDEN, "bias slab rows padded to INTERMEDIATE"

    def row(x):  # (1, n) -> (1, INTERMEDIATE), zero-padded along lanes
        return jnp.pad(x, ((0, 0), (0, INTERMEDIATE - x.shape[1])))

    vec = jnp.stack([
        jnp.concatenate([
            row(jnp.concatenate([p["bq"], p["bk"], p["bv"]], axis=1)),  # row 0: bqkv
            row(p["bo"]),    # row 1
            row(p["g1"]),    # row 2
            row(p["be1"]),   # row 3
            row(p["bi"]),    # row 4 (exactly INTERMEDIATE wide)
            row(p["bo2"]),   # row 5
            row(p["g2"]),    # row 6
            row(p["be2"]),   # row 7
        ], axis=0)
        for p in layer_params])                                        # (L, 8, I) f32
    return wqkv, wo, wi, wo2, vec


@jax.jit
def roberta_partial_encoder(hidden_states, attention_mask, layer_params):
    """Matches RobertaPartialEncoder.forward: mask extension + layer stack."""
    B, S, H = hidden_states.shape
    L = len(layer_params)
    dtype = hidden_states.dtype
    NS = NUM_HEADS * S

    bias_slab, head_mask, block_ones = _attention_constants(attention_mask, dtype)
    wqkv, wo, wi, wo2, vec = _stack_layer_params(layer_params)

    def per_batch(shape):      # blocked along the (parallel) batch grid axis
        nd = len(shape)
        return pl.BlockSpec((1,) + tuple(shape[1:]),
                            lambda b, _nd=nd: (b,) + (0,) * (_nd - 1))

    def resident(arr):         # full array, same block every step (loaded once)
        nd = arr.ndim
        return pl.BlockSpec(arr.shape, lambda b, _nd=nd: (0,) * _nd)

    # TODO(synk): at real RoBERTa sizes (H=768, I=3072) the fully-resident
    # weight scheme exceeds v7x's 64 MiB VMEM; switch back to a layer grid
    # axis with bf16 streamed weights and set vmem_limit_bytes explicitly.
    out = pl.pallas_call(
        _make_encoder_kernel(L),
        out_shape=jax.ShapeDtypeStruct((B, S, H), dtype),
        grid=(B,),
        in_specs=[per_batch((B, S, H)),        # hidden states, one batch row/step
                  per_batch((B, 1, NS)),       # key-padding bias slab
                  resident(head_mask), resident(block_ones),
                  resident(wqkv), resident(wo), resident(wi), resident(wo2),
                  resident(vec)],
        out_specs=pl.BlockSpec((1, S, H), lambda b: (b, 0, 0)),
        compiler_params=pltpu.CompilerParams(
            # Batch rows are independent (attention never crosses batches), so
            # the axis is parallel: on v7x the two TensorCores split the batch;
            # a no-op on v5e/v6e (single TC).
            dimension_semantics=("parallel",)),
    )(hidden_states, bias_slab, head_mask, block_ones, wqkv, wo, wi, wo2, vec)
    return out


def _init_layer_params(key):
    # TODO(synk): weights are deterministic synthetic init, not a pretrained
    # RobertaModel.from_pretrained checkpoint.
    ks = jax.random.split(key, 8)
    w = lambda k, shape: 0.1 * jax.random.normal(k, shape, dtype=jnp.float32)
    zeros = lambda n: jnp.zeros((1, n), jnp.float32)
    ones = lambda n: jnp.ones((1, n), jnp.float32)
    return {
        "wq": w(ks[0], (HIDDEN, HIDDEN)), "bq": w(ks[1], (1, HIDDEN)),
        "wk": w(ks[2], (HIDDEN, HIDDEN)), "bk": zeros(HIDDEN),
        "wv": w(ks[3], (HIDDEN, HIDDEN)), "bv": zeros(HIDDEN),
        "wo": w(ks[4], (HIDDEN, HIDDEN)), "bo": zeros(HIDDEN),
        "g1": ones(HIDDEN), "be1": zeros(HIDDEN),
        "wi": w(ks[5], (HIDDEN, INTERMEDIATE)), "bi": w(ks[6], (1, INTERMEDIATE)),
        "wo2": w(ks[7], (INTERMEDIATE, HIDDEN)), "bo2": zeros(HIDDEN),
        "g2": ones(HIDDEN), "be2": zeros(HIDDEN),
    }


def _reference(hidden, attention_mask, layer_params):
    """Pure-JAX reference of the module's math (exact erf GELU, per-batch softmax)."""
    B, S, H = hidden.shape
    hp = lax.Precision.HIGHEST
    mask_bias = ((1.0 - attention_mask.astype(hidden.dtype)) * -10000.0)[:, None, None, :]
    for p in layer_params:
        q = (jnp.einsum('bsh,hk->bsk', hidden, p['wq'], precision=hp) + p['bq']
             ).reshape(B, S, NUM_HEADS, HEAD_DIM)
        k = (jnp.einsum('bsh,hk->bsk', hidden, p['wk'], precision=hp) + p['bk']
             ).reshape(B, S, NUM_HEADS, HEAD_DIM)
        v = (jnp.einsum('bsh,hk->bsk', hidden, p['wv'], precision=hp) + p['bv']
             ).reshape(B, S, NUM_HEADS, HEAD_DIM)
        scores = jnp.einsum('bqnd,bknd->bnqk', q, k, precision=hp) / math.sqrt(HEAD_DIM)
        scores = scores + mask_bias
        probs = jax.nn.softmax(scores, axis=-1)
        ctx = jnp.einsum('bnqk,bknd->bqnd', probs, v, precision=hp).reshape(B, S, H)
        attn = jnp.einsum('bsh,hk->bsk', ctx, p['wo'], precision=hp) + p['bo']
        h1 = _layer_norm_ref(attn + hidden, p['g1'], p['be1'])
        inter = _gelu_exact(jnp.einsum('bsh,hk->bsk', h1, p['wi'], precision=hp) + p['bi'])
        out = jnp.einsum('bsh,hk->bsk', inter, p['wo2'], precision=hp) + p['bo2']
        hidden = _layer_norm_ref(out + h1, p['g2'], p['be2'])
    return hidden


if __name__ == "__main__":
    key = jax.random.PRNGKey(0)
    k_h, k_p = jax.random.split(key)
    hidden = jax.random.normal(k_h, (BATCH, SEQ, HIDDEN), dtype=jnp.float32)
    # batch 0: full attention; batch 1: last two tokens padded.
    attention_mask = jnp.array([[1.0] * SEQ,
                                [1.0] * (SEQ - 2) + [0.0] * 2], dtype=jnp.float32)
    layer_params = [_init_layer_params(k) for k in jax.random.split(k_p, NUM_LAYERS)]

    out = roberta_partial_encoder(hidden, attention_mask, layer_params)
    out = jax.block_until_ready(out)

    ref = _reference(hidden, attention_mask, layer_params)
    assert out.shape == (BATCH, SEQ, HIDDEN)
    max_err = float(jnp.max(jnp.abs(out - ref)))
    assert max_err < 1e-2, f"mismatch vs reference: {max_err}"
    print("KERNEL_OK")
</pallas_src>

<mosaic_0001>
module attributes {stable_mosaic.version = 11 : i64} {
  func.func @kernel(%arg0: i32, %arg1: memref<1x8x32xf32, #tpu.memory_space<vmem>>, %arg2: memref<1x1x32xf32, #tpu.memory_space<vmem>>, %arg3: memref<32x32xf32, #tpu.memory_space<vmem>>, %arg4: memref<32x32xf32, #tpu.memory_space<vmem>>, %arg5: memref<2x32x96xf32, #tpu.memory_space<vmem>>, %arg6: memref<2x32x32xf32, #tpu.memory_space<vmem>>, %arg7: memref<2x32x128xf32, #tpu.memory_space<vmem>>, %arg8: memref<2x128x32xf32, #tpu.memory_space<vmem>>, %arg9: memref<2x8x128xf32, #tpu.memory_space<vmem>>, %arg10: memref<1x8x32xf32, #tpu.memory_space<vmem>>) attributes {dimension_semantics = [#tpu.dimension_semantics<parallel>], iteration_bounds = array<i64: 2>, scalar_prefetch = 0 : i64, scratch_operands = 0 : i64, tpu.core_type = #tpu.core_type<tc>, window_params = [{transform_indices = @transform_0, window_bounds = array<i64: 1, 8, 32>}, {transform_indices = @transform_1, window_bounds = array<i64: 1, 1, 32>}, {pipeline_mode = #tpu.pipeline_mode<synchronous>, transform_indices = @transform_2, window_bounds = array<i64: 32, 32>}, {pipeline_mode = #tpu.pipeline_mode<synchronous>, transform_indices = @transform_3, window_bounds = array<i64: 32, 32>}, {pipeline_mode = #tpu.pipeline_mode<synchronous>, transform_indices = @transform_4, window_bounds = array<i64: 2, 32, 96>}, {pipeline_mode = #tpu.pipeline_mode<synchronous>, transform_indices = @transform_5, window_bounds = array<i64: 2, 32, 32>}, {pipeline_mode = #tpu.pipeline_mode<synchronous>, transform_indices = @transform_6, window_bounds = array<i64: 2, 32, 128>}, {pipeline_mode = #tpu.pipeline_mode<synchronous>, transform_indices = @transform_7, window_bounds = array<i64: 2, 128, 32>}, {pipeline_mode = #tpu.pipeline_mode<synchronous>, transform_indices = @transform_8, window_bounds = array<i64: 2, 8, 128>}, {transform_indices = @transform_9, window_bounds = array<i64: 1, 8, 32>}]} {
    %c0 = arith.constant 0 : index
    %c0_0 = arith.constant 0 : index
    %c0_1 = arith.constant 0 : index
    %0 = vector.load %arg1[%c0, %c0_0, %c0_1] : memref<1x8x32xf32, #tpu.memory_space<vmem>>, vector<1x8x32xf32>
    %1 = vector.shape_cast %0 : vector<1x8x32xf32> to vector<8x32xf32>
    %c0_2 = arith.constant 0 : index
    %c0_3 = arith.constant 0 : index
    %c0_4 = arith.constant 0 : index
    %2 = vector.load %arg2[%c0_2, %c0_3, %c0_4] : memref<1x1x32xf32, #tpu.memory_space<vmem>>, vector<1x1x32xf32>
    %3 = vector.shape_cast %2 : vector<1x1x32xf32> to vector<1x32xf32>
    %c0_5 = arith.constant 0 : index
    %c0_6 = arith.constant 0 : index
    %4 = vector.load %arg3[%c0_5, %c0_6] : memref<32x32xf32, #tpu.memory_space<vmem>>, vector<32x32xf32>
    %c0_7 = arith.constant 0 : index
    %c0_8 = arith.constant 0 : index
    %5 = vector.load %arg4[%c0_7, %c0_8] : memref<32x32xf32, #tpu.memory_space<vmem>>, vector<32x32xf32>
    %c0_9 = arith.constant 0 : index
    %c0_10 = arith.constant 0 : index
    %c0_11 = arith.constant 0 : index
    %6 = vector.load %arg5[%c0_9, %c0_10, %c0_11] : memref<2x32x96xf32, #tpu.memory_space<vmem>>, vector<1x32x96xf32>
    %7 = vector.shape_cast %6 : vector<1x32x96xf32> to vector<32x96xf32>
    %c0_12 = arith.constant 0 : index
    %c0_13 = arith.constant 0 : index
    %c0_14 = arith.constant 0 : index
    %8 = vector.load %arg6[%c0_12, %c0_13, %c0_14] : memref<2x32x32xf32, #tpu.memory_space<vmem>>, vector<1x32x32xf32>
    %9 = vector.shape_cast %8 : vector<1x32x32xf32> to vector<32x32xf32>
    %c0_15 = arith.constant 0 : index
    %c0_16 = arith.constant 0 : index
    %c0_17 = arith.constant 0 : index
    %10 = vector.load %arg7[%c0_15, %c0_16, %c0_17] : memref<2x32x128xf32, #tpu.memory_space<vmem>>, vector<1x32x128xf32>
    %11 = vector.shape_cast %10 : vector<1x32x128xf32> to vector<32x128xf32>
    %c0_18 = arith.constant 0 : index
    %c0_19 = arith.constant 0 : index
    %c0_20 = arith.constant 0 : index
    %12 = vector.load %arg8[%c0_18, %c0_19, %c0_20] : memref<2x128x32xf32, #tpu.memory_space<vmem>>, vector<1x128x32xf32>
    %13 = vector.shape_cast %12 : vector<1x128x32xf32> to vector<128x32xf32>
    %c0_21 = arith.constant 0 : index
    %c0_22 = arith.constant 0 : index
    %c0_23 = arith.constant 0 : index
    %14 = vector.load %arg9[%c0_21, %c0_22, %c0_23] : memref<2x8x128xf32, #tpu.memory_space<vmem>>, vector<1x8x128xf32>
    %15 = vector.shape_cast %14 : vector<1x8x128xf32> to vector<8x128xf32>
    %16 = vector.extract_strided_slice %15 {offsets = [0, 0], sizes = [1, 96], strides = [1, 1]} : vector<8x128xf32> to vector<1x96xf32>
    %17 = vector.extract_strided_slice %15 {offsets = [1, 0], sizes = [1, 32], strides = [1, 1]} : vector<8x128xf32> to vector<1x32xf32>
    %18 = vector.extract_strided_slice %15 {offsets = [2, 0], sizes = [1, 32], strides = [1, 1]} : vector<8x128xf32> to vector<1x32xf32>
    %19 = vector.extract_strided_slice %15 {offsets = [3, 0], sizes = [1, 32], strides = [1, 1]} : vector<8x128xf32> to vector<1x32xf32>
    %20 = vector.extract_strided_slice %15 {offsets = [4, 0], sizes = [1, 128], strides = [1, 1]} : vector<8x128xf32> to vector<1x128xf32>
    %21 = vector.extract_strided_slice %15 {offsets = [5, 0], sizes = [1, 32], strides = [1, 1]} : vector<8x128xf32> to vector<1x32xf32>
    %22 = vector.extract_strided_slice %15 {offsets = [6, 0], sizes = [1, 32], strides = [1, 1]} : vector<8x128xf32> to vector<1x32xf32>
    %23 = vector.extract_strided_slice %15 {offsets = [7, 0], sizes = [1, 32], strides = [1, 1]} : vector<8x128xf32> to vector<1x32xf32>
    %cst = arith.constant dense<0.000000e+00> : vector<8x96xf32>
    %24 = tpu.matmul %1, %7, %cst {dimension_numbers = #tpu.dot_dimension_numbers<[1], [0], [0], [1], [0, 0, 1, 1], [], []>} : vector<8x32xf32>, vector<32x96xf32>, vector<8x96xf32> -> vector<8x96xf32>
    %25 = vector.broadcast %16 : vector<1x96xf32> to vector<8x96xf32>
    %26 = arith.addf %24, %25 : vector<8x96xf32>
    %27 = vector.extract_strided_slice %26 {offsets = [0, 0], sizes = [8, 32], strides = [1, 1]} : vector<8x96xf32> to vector<8x32xf32>
    %cst_24 = arith.constant 0.353553385 : f32
    %28 = vector.broadcast %cst_24 : f32 to vector<8x32xf32>
    %29 = arith.mulf %27, %28 : vector<8x32xf32>
    %30 = vector.extract_strided_slice %26 {offsets = [0, 32], sizes = [8, 32], strides = [1, 1]} : vector<8x96xf32> to vector<8x32xf32>
    %31 = vector.extract_strided_slice %26 {offsets = [0, 64], sizes = [8, 32], strides = [1, 1]} : vector<8x96xf32> to vector<8x32xf32>
    %32 = tpu.concatenate %30, %30, %30, %30 in 0 : vector<8x32xf32>, vector<8x32xf32>, vector<8x32xf32>, vector<8x32xf32> -> vector<32x32xf32>
    %33 = arith.mulf %32, %4 : vector<32x32xf32>
    %34 = tpu.concatenate %31, %31, %31, %31 in 0 : vector<8x32xf32>, vector<8x32xf32>, vector<8x32xf32>, vector<8x32xf32> -> vector<32x32xf32>
    %35 = arith.mulf %34, %4 : vector<32x32xf32>
    %cst_25 = arith.constant dense<0.000000e+00> : vector<8x32xf32>
    %36 = tpu.matmul %29, %33, %cst_25 {dimension_numbers = #tpu.dot_dimension_numbers<[1], [1], [0], [0], [0, 0, 1, 0], [], []>} : vector<8x32xf32>, vector<32x32xf32>, vector<8x32xf32> -> vector<8x32xf32>
    %37 = vector.broadcast %3 : vector<1x32xf32> to vector<8x32xf32>
    %38 = arith.addf %36, %37 : vector<8x32xf32>
    %cst_26 = arith.constant dense<0xFF800000> : vector<8xf32>
    %39 = vector.multi_reduction <maximumf>, %38, %cst_26 [1] : vector<8x32xf32> to vector<8xf32>
    %40 = vector.shape_cast %39 : vector<8xf32> to vector<8x1xf32>
    %41 = vector.broadcast %40 : vector<8x1xf32> to vector<8x32xf32>
    %42 = arith.subf %38, %41 : vector<8x32xf32>
    %43 = math.exp %42 : vector<8x32xf32>
    %cst_27 = arith.constant dense<0.000000e+00> : vector<8x32xf32>
    %44 = tpu.matmul %43, %5, %cst_27 {dimension_numbers = #tpu.dot_dimension_numbers<[1], [0], [0], [1], [0, 0, 1, 1], [], []>} : vector<8x32xf32>, vector<32x32xf32>, vector<8x32xf32> -> vector<8x32xf32>
    %45 = tpu.reciprocal %44 {approx = true} : vector<8x32xf32> -> vector<8x32xf32>
    %46 = arith.mulf %43, %45 : vector<8x32xf32>
    %cst_28 = arith.constant dense<0.000000e+00> : vector<8x32xf32>
    %47 = tpu.matmul %46, %35, %cst_28 {dimension_numbers = #tpu.dot_dimension_numbers<[1], [0], [0], [1], [0, 0, 1, 1], [], []>} : vector<8x32xf32>, vector<32x32xf32>, vector<8x32xf32> -> vector<8x32xf32>
    %cst_29 = arith.constant dense<0.000000e+00> : vector<8x32xf32>
    %48 = tpu.matmul %47, %9, %cst_29 {dimension_numbers = #tpu.dot_dimension_numbers<[1], [0], [0], [1], [0, 0, 1, 1], [], []>} : vector<8x32xf32>, vector<32x32xf32>, vector<8x32xf32> -> vector<8x32xf32>
    %49 = vector.broadcast %17 : vector<1x32xf32> to vector<8x32xf32>
    %50 = arith.addf %48, %49 : vector<8x32xf32>
    %51 = arith.addf %50, %1 : vector<8x32xf32>
    %cst_30 = arith.constant dense<0.000000e+00> : vector<8xf32>
    %52 = vector.multi_reduction <add>, %51, %cst_30 [1] : vector<8x32xf32> to vector<8xf32>
    %53 = vector.shape_cast %52 : vector<8xf32> to vector<8x1xf32>
    %cst_31 = arith.constant 3.200000e+01 : f32
    %54 = vector.broadcast %cst_31 : f32 to vector<8x1xf32>
    %55 = arith.divf %53, %54 : vector<8x1xf32>
    %56 = arith.mulf %51, %51 : vector<8x32xf32>
    %cst_32 = arith.constant dense<0.000000e+00> : vector<8xf32>
    %57 = vector.multi_reduction <add>, %56, %cst_32 [1] : vector<8x32xf32> to vector<8xf32>
    %58 = vector.shape_cast %57 : vector<8xf32> to vector<8x1xf32>
    %cst_33 = arith.constant 3.200000e+01 : f32
    %59 = vector.broadcast %cst_33 : f32 to vector<8x1xf32>
    %60 = arith.divf %58, %59 : vector<8x1xf32>
    %61 = arith.mulf %55, %55 : vector<8x1xf32>
    %62 = arith.subf %60, %61 : vector<8x1xf32>
    %63 = vector.broadcast %55 : vector<8x1xf32> to vector<8x32xf32>
    %64 = arith.subf %51, %63 : vector<8x32xf32>
    %cst_34 = arith.constant 9.99999974E-6 : f32
    %65 = vector.broadcast %cst_34 : f32 to vector<8x1xf32>
    %66 = arith.addf %62, %65 : vector<8x1xf32>
    %67 = math.rsqrt %66 : vector<8x1xf32>
    %68 = vector.broadcast %67 : vector<8x1xf32> to vector<8x32xf32>
    %69 = arith.mulf %64, %68 : vector<8x32xf32>
    %70 = vector.broadcast %18 : vector<1x32xf32> to vector<8x32xf32>
    %71 = arith.mulf %69, %70 : vector<8x32xf32>
    %72 = vector.broadcast %19 : vector<1x32xf32> to vector<8x32xf32>
    %73 = arith.addf %71, %72 : vector<8x32xf32>
    %cst_35 = arith.constant dense<0.000000e+00> : vector<8x128xf32>
    %74 = tpu.matmul %73, %11, %cst_35 {dimension_numbers = #tpu.dot_dimension_numbers<[1], [0], [0], [1], [0, 0, 1, 1], [], []>} : vector<8x32xf32>, vector<32x128xf32>, vector<8x128xf32> -> vector<8x128xf32>
    %75 = vector.broadcast %20 : vector<1x128xf32> to vector<8x128xf32>
    %76 = arith.addf %74, %75 : vector<8x128xf32>
    %cst_36 = arith.constant 5.000000e-01 : f32
    %77 = vector.broadcast %cst_36 : f32 to vector<8x128xf32>
    %78 = arith.mulf %77, %76 : vector<8x128xf32>
    %cst_37 = arith.constant 4.471500e-02 : f32
    %79 = vector.broadcast %cst_37 : f32 to vector<8x128xf32>
    %80 = arith.mulf %79, %76 : vector<8x128xf32>
    %81 = arith.mulf %80, %76 : vector<8x128xf32>
    %82 = arith.mulf %81, %76 : vector<8x128xf32>
    %83 = arith.addf %76, %82 : vector<8x128xf32>
    %cst_38 = arith.constant 0.797884583 : f32
    %84 = vector.broadcast %cst_38 : f32 to vector<8x128xf32>
    %85 = arith.mulf %84, %83 : vector<8x128xf32>
    %86 = math.tanh %85 : vector<8x128xf32>
    %cst_39 = arith.constant 1.000000e+00 : f32
    %87 = vector.broadcast %cst_39 : f32 to vector<8x128xf32>
    %88 = arith.addf %87, %86 : vector<8x128xf32>
    %89 = arith.mulf %78, %88 : vector<8x128xf32>
    %cst_40 = arith.constant dense<0.000000e+00> : vector<8x32xf32>
    %90 = tpu.matmul %89, %13, %cst_40 {dimension_numbers = #tpu.dot_dimension_numbers<[1], [0], [0], [1], [0, 0, 1, 1], [], []>} : vector<8x128xf32>, vector<128x32xf32>, vector<8x32xf32> -> vector<8x32xf32>
    %91 = vector.broadcast %21 : vector<1x32xf32> to vector<8x32xf32>
    %92 = arith.addf %90, %91 : vector<8x32xf32>
    %93 = arith.addf %92, %73 : vector<8x32xf32>
    %cst_41 = arith.constant dense<0.000000e+00> : vector<8xf32>
    %94 = vector.multi_reduction <add>, %93, %cst_41 [1] : vector<8x32xf32> to vector<8xf32>
    %95 = vector.shape_cast %94 : vector<8xf32> to vector<8x1xf32>
    %cst_42 = arith.constant 3.200000e+01 : f32
    %96 = vector.broadcast %cst_42 : f32 to vector<8x1xf32>
    %97 = arith.divf %95, %96 : vector<8x1xf32>
    %98 = arith.mulf %93, %93 : vector<8x32xf32>
    %cst_43 = arith.constant dense<0.000000e+00> : vector<8xf32>
    %99 = vector.multi_reduction <add>, %98, %cst_43 [1] : vector<8x32xf32> to vector<8xf32>
    %100 = vector.shape_cast %99 : vector<8xf32> to vector<8x1xf32>
    %cst_44 = arith.constant 3.200000e+01 : f32
    %101 = vector.broadcast %cst_44 : f32 to vector<8x1xf32>
    %102 = arith.divf %100, %101 : vector<8x1xf32>
    %103 = arith.mulf %97, %97 : vector<8x1xf32>
    %104 = arith.subf %102, %103 : vector<8x1xf32>
    %105 = vector.broadcast %97 : vector<8x1xf32> to vector<8x32xf32>
    %106 = arith.subf %93, %105 : vector<8x32xf32>
    %cst_45 = arith.constant 9.99999974E-6 : f32
    %107 = vector.broadcast %cst_45 : f32 to vector<8x1xf32>
    %108 = arith.addf %104, %107 : vector<8x1xf32>
    %109 = math.rsqrt %108 : vector<8x1xf32>
    %110 = vector.broadcast %109 : vector<8x1xf32> to vector<8x32xf32>
    %111 = arith.mulf %106, %110 : vector<8x32xf32>
    %112 = vector.broadcast %22 : vector<1x32xf32> to vector<8x32xf32>
    %113 = arith.mulf %111, %112 : vector<8x32xf32>
    %114 = vector.broadcast %23 : vector<1x32xf32> to vector<8x32xf32>
    %115 = arith.addf %113, %114 : vector<8x32xf32>
    %c1 = arith.constant 1 : index
    %c0_46 = arith.constant 0 : index
    %c0_47 = arith.constant 0 : index
    %116 = vector.load %arg5[%c1, %c0_46, %c0_47] : memref<2x32x96xf32, #tpu.memory_space<vmem>>, vector<1x32x96xf32>
    %117 = vector.shape_cast %116 : vector<1x32x96xf32> to vector<32x96xf32>
    %c1_48 = arith.constant 1 : index
    %c0_49 = arith.constant 0 : index
    %c0_50 = arith.constant 0 : index
    %118 = vector.load %arg6[%c1_48, %c0_49, %c0_50] : memref<2x32x32xf32, #tpu.memory_space<vmem>>, vector<1x32x32xf32>
    %119 = vector.shape_cast %118 : vector<1x32x32xf32> to vector<32x32xf32>
    %c1_51 = arith.constant 1 : index
    %c0_52 = arith.constant 0 : index
    %c0_53 = arith.constant 0 : index
    %120 = vector.load %arg7[%c1_51, %c0_52, %c0_53] : memref<2x32x128xf32, #tpu.memory_space<vmem>>, vector<1x32x128xf32>
    %121 = vector.shape_cast %120 : vector<1x32x128xf32> to vector<32x128xf32>
    %c1_54 = arith.constant 1 : index
    %c0_55 = arith.constant 0 : index
    %c0_56 = arith.constant 0 : index
    %122 = vector.load %arg8[%c1_54, %c0_55, %c0_56] : memref<2x128x32xf32, #tpu.memory_space<vmem>>, vector<1x128x32xf32>
    %123 = vector.shape_cast %122 : vector<1x128x32xf32> to vector<128x32xf32>
    %c1_57 = arith.constant 1 : index
    %c0_58 = arith.constant 0 : index
    %c0_59 = arith.constant 0 : index
    %124 = vector.load %arg9[%c1_57, %c0_58, %c0_59] : memref<2x8x128xf32, #tpu.memory_space<vmem>>, vector<1x8x128xf32>
    %125 = vector.shape_cast %124 : vector<1x8x128xf32> to vector<8x128xf32>
    %126 = vector.extract_strided_slice %125 {offsets = [0, 0], sizes = [1, 96], strides = [1, 1]} : vector<8x128xf32> to vector<1x96xf32>
    %127 = vector.extract_strided_slice %125 {offsets = [1, 0], sizes = [1, 32], strides = [1, 1]} : vector<8x128xf32> to vector<1x32xf32>
    %128 = vector.extract_strided_slice %125 {offsets = [2, 0], sizes = [1, 32], strides = [1, 1]} : vector<8x128xf32> to vector<1x32xf32>
    %129 = vector.extract_strided_slice %125 {offsets = [3, 0], sizes = [1, 32], strides = [1, 1]} : vector<8x128xf32> to vector<1x32xf32>
    %130 = vector.extract_strided_slice %125 {offsets = [4, 0], sizes = [1, 128], strides = [1, 1]} : vector<8x128xf32> to vector<1x128xf32>
    %131 = vector.extract_strided_slice %125 {offsets = [5, 0], sizes = [1, 32], strides = [1, 1]} : vector<8x128xf32> to vector<1x32xf32>
    %132 = vector.extract_strided_slice %125 {offsets = [6, 0], sizes = [1, 32], strides = [1, 1]} : vector<8x128xf32> to vector<1x32xf32>
    %133 = vector.extract_strided_slice %125 {offsets = [7, 0], sizes = [1, 32], strides = [1, 1]} : vector<8x128xf32> to vector<1x32xf32>
    %cst_60 = arith.constant dense<0.000000e+00> : vector<8x96xf32>
    %134 = tpu.matmul %115, %117, %cst_60 {dimension_numbers = #tpu.dot_dimension_numbers<[1], [0], [0], [1], [0, 0, 1, 1], [], []>} : vector<8x32xf32>, vector<32x96xf32>, vector<8x96xf32> -> vector<8x96xf32>
    %135 = vector.broadcast %126 : vector<1x96xf32> to vector<8x96xf32>
    %136 = arith.addf %134, %135 : vector<8x96xf32>
    %137 = vector.extract_strided_slice %136 {offsets = [0, 0], sizes = [8, 32], strides = [1, 1]} : vector<8x96xf32> to vector<8x32xf32>
    %cst_61 = arith.constant 0.353553385 : f32
    %138 = vector.broadcast %cst_61 : f32 to vector<8x32xf32>
    %139 = arith.mulf %137, %138 : vector<8x32xf32>
    %140 = vector.extract_strided_slice %136 {offsets = [0, 32], sizes = [8, 32], strides = [1, 1]} : vector<8x96xf32> to vector<8x32xf32>
    %141 = vector.extract_strided_slice %136 {offsets = [0, 64], sizes = [8, 32], strides = [1, 1]} : vector<8x96xf32> to vector<8x32xf32>
    %142 = tpu.concatenate %140, %140, %140, %140 in 0 : vector<8x32xf32>, vector<8x32xf32>, vector<8x32xf32>, vector<8x32xf32> -> vector<32x32xf32>
    %143 = arith.mulf %142, %4 : vector<32x32xf32>
    %144 = tpu.concatenate %141, %141, %141, %141 in 0 : vector<8x32xf32>, vector<8x32xf32>, vector<8x32xf32>, vector<8x32xf32> -> vector<32x32xf32>
    %145 = arith.mulf %144, %4 : vector<32x32xf32>
    %cst_62 = arith.constant dense<0.000000e+00> : vector<8x32xf32>
    %146 = tpu.matmul %139, %143, %cst_62 {dimension_numbers = #tpu.dot_dimension_numbers<[1], [1], [0], [0], [0, 0, 1, 0], [], []>} : vector<8x32xf32>, vector<32x32xf32>, vector<8x32xf32> -> vector<8x32xf32>
    %147 = vector.broadcast %3 : vector<1x32xf32> to vector<8x32xf32>
    %148 = arith.addf %146, %147 : vector<8x32xf32>
    %cst_63 = arith.constant dense<0xFF800000> : vector<8xf32>
    %149 = vector.multi_reduction <maximumf>, %148, %cst_63 [1] : vector<8x32xf32> to vector<8xf32>
    %150 = vector.shape_cast %149 : vector<8xf32> to vector<8x1xf32>
    %151 = vector.broadcast %150 : vector<8x1xf32> to vector<8x32xf32>
    %152 = arith.subf %148, %151 : vector<8x32xf32>
    %153 = math.exp %152 : vector<8x32xf32>
    %cst_64 = arith.constant dense<0.000000e+00> : vector<8x32xf32>
    %154 = tpu.matmul %153, %5, %cst_64 {dimension_numbers = #tpu.dot_dimension_numbers<[1], [0], [0], [1], [0, 0, 1, 1], [], []>} : vector<8x32xf32>, vector<32x32xf32>, vector<8x32xf32> -> vector<8x32xf32>
    %155 = tpu.reciprocal %154 {approx = true} : vector<8x32xf32> -> vector<8x32xf32>
    %156 = arith.mulf %153, %155 : vector<8x32xf32>
    %cst_65 = arith.constant dense<0.000000e+00> : vector<8x32xf32>
    %157 = tpu.matmul %156, %145, %cst_65 {dimension_numbers = #tpu.dot_dimension_numbers<[1], [0], [0], [1], [0, 0, 1, 1], [], []>} : vector<8x32xf32>, vector<32x32xf32>, vector<8x32xf32> -> vector<8x32xf32>
    %cst_66 = arith.constant dense<0.000000e+00> : vector<8x32xf32>
    %158 = tpu.matmul %157, %119, %cst_66 {dimension_numbers = #tpu.dot_dimension_numbers<[1], [0], [0], [1], [0, 0, 1, 1], [], []>} : vector<8x32xf32>, vector<32x32xf32>, vector<8x32xf32> -> vector<8x32xf32>
    %159 = vector.broadcast %127 : vector<1x32xf32> to vector<8x32xf32>
    %160 = arith.addf %158, %159 : vector<8x32xf32>
    %161 = arith.addf %160, %115 : vector<8x32xf32>
    %cst_67 = arith.constant dense<0.000000e+00> : vector<8xf32>
    %162 = vector.multi_reduction <add>, %161, %cst_67 [1] : vector<8x32xf32> to vector<8xf32>
    %163 = vector.shape_cast %162 : vector<8xf32> to vector<8x1xf32>
    %cst_68 = arith.constant 3.200000e+01 : f32
    %164 = vector.broadcast %cst_68 : f32 to vector<8x1xf32>
    %165 = arith.divf %163, %164 : vector<8x1xf32>
    %166 = arith.mulf %161, %161 : vector<8x32xf32>
    %cst_69 = arith.constant dense<0.000000e+00> : vector<8xf32>
    %167 = vector.multi_reduction <add>, %166, %cst_69 [1] : vector<8x32xf32> to vector<8xf32>
    %168 = vector.shape_cast %167 : vector<8xf32> to vector<8x1xf32>
    %cst_70 = arith.constant 3.200000e+01 : f32
    %169 = vector.broadcast %cst_70 : f32 to vector<8x1xf32>
    %170 = arith.divf %168, %169 : vector<8x1xf32>
    %171 = arith.mulf %165, %165 : vector<8x1xf32>
    %172 = arith.subf %170, %171 : vector<8x1xf32>
    %173 = vector.broadcast %165 : vector<8x1xf32> to vector<8x32xf32>
    %174 = arith.subf %161, %173 : vector<8x32xf32>
    %cst_71 = arith.constant 9.99999974E-6 : f32
    %175 = vector.broadcast %cst_71 : f32 to vector<8x1xf32>
    %176 = arith.addf %172, %175 : vector<8x1xf32>
    %177 = math.rsqrt %176 : vector<8x1xf32>
    %178 = vector.broadcast %177 : vector<8x1xf32> to vector<8x32xf32>
    %179 = arith.mulf %174, %178 : vector<8x32xf32>
    %180 = vector.broadcast %128 : vector<1x32xf32> to vector<8x32xf32>
    %181 = arith.mulf %179, %180 : vector<8x32xf32>
    %182 = vector.broadcast %129 : vector<1x32xf32> to vector<8x32xf32>
    %183 = arith.addf %181, %182 : vector<8x32xf32>
    %cst_72 = arith.constant dense<0.000000e+00> : vector<8x128xf32>
    %184 = tpu.matmul %183, %121, %cst_72 {dimension_numbers = #tpu.dot_dimension_numbers<[1], [0], [0], [1], [0, 0, 1, 1], [], []>} : vector<8x32xf32>, vector<32x128xf32>, vector<8x128xf32> -> vector<8x128xf32>
    %185 = vector.broadcast %130 : vector<1x128xf32> to vector<8x128xf32>
    %186 = arith.addf %184, %185 : vector<8x128xf32>
    %cst_73 = arith.constant 5.000000e-01 : f32
    %187 = vector.broadcast %cst_73 : f32 to vector<8x128xf32>
    %188 = arith.mulf %187, %186 : vector<8x128xf32>
    %cst_74 = arith.constant 4.471500e-02 : f32
    %189 = vector.broadcast %cst_74 : f32 to vector<8x128xf32>
    %190 = arith.mulf %189, %186 : vector<8x128xf32>
    %191 = arith.mulf %190, %186 : vector<8x128xf32>
    %192 = arith.mulf %191, %186 : vector<8x128xf32>
    %193 = arith.addf %186, %192 : vector<8x128xf32>
    %cst_75 = arith.constant 0.797884583 : f32
    %194 = vector.broadcast %cst_75 : f32 to vector<8x128xf32>
    %195 = arith.mulf %194, %193 : vector<8x128xf32>
    %196 = math.tanh %195 : vector<8x128xf32>
    %cst_76 = arith.constant 1.000000e+00 : f32
    %197 = vector.broadcast %cst_76 : f32 to vector<8x128xf32>
    %198 = arith.addf %197, %196 : vector<8x128xf32>
    %199 = arith.mulf %188, %198 : vector<8x128xf32>
    %cst_77 = arith.constant dense<0.000000e+00> : vector<8x32xf32>
    %200 = tpu.matmul %199, %123, %cst_77 {dimension_numbers = #tpu.dot_dimension_numbers<[1], [0], [0], [1], [0, 0, 1, 1], [], []>} : vector<8x128xf32>, vector<128x32xf32>, vector<8x32xf32> -> vector<8x32xf32>
    %201 = vector.broadcast %131 : vector<1x32xf32> to vector<8x32xf32>
    %202 = arith.addf %200, %201 : vector<8x32xf32>
    %203 = arith.addf %202, %183 : vector<8x32xf32>
    %cst_78 = arith.constant dense<0.000000e+00> : vector<8xf32>
    %204 = vector.multi_reduction <add>, %203, %cst_78 [1] : vector<8x32xf32> to vector<8xf32>
    %205 = vector.shape_cast %204 : vector<8xf32> to vector<8x1xf32>
    %cst_79 = arith.constant 3.200000e+01 : f32
    %206 = vector.broadcast %cst_79 : f32 to vector<8x1xf32>
    %207 = arith.divf %205, %206 : vector<8x1xf32>
    %208 = arith.mulf %203, %203 : vector<8x32xf32>
    %cst_80 = arith.constant dense<0.000000e+00> : vector<8xf32>
    %209 = vector.multi_reduction <add>, %208, %cst_80 [1] : vector<8x32xf32> to vector<8xf32>
    %210 = vector.shape_cast %209 : vector<8xf32> to vector<8x1xf32>
    %cst_81 = arith.constant 3.200000e+01 : f32
    %211 = vector.broadcast %cst_81 : f32 to vector<8x1xf32>
    %212 = arith.divf %210, %211 : vector<8x1xf32>
    %213 = arith.mulf %207, %207 : vector<8x1xf32>
    %214 = arith.subf %212, %213 : vector<8x1xf32>
    %215 = vector.broadcast %207 : vector<8x1xf32> to vector<8x32xf32>
    %216 = arith.subf %203, %215 : vector<8x32xf32>
    %cst_82 = arith.constant 9.99999974E-6 : f32
    %217 = vector.broadcast %cst_82 : f32 to vector<8x1xf32>
    %218 = arith.addf %214, %217 : vector<8x1xf32>
    %219 = math.rsqrt %218 : vector<8x1xf32>
    %220 = vector.broadcast %219 : vector<8x1xf32> to vector<8x32xf32>
    %221 = arith.mulf %216, %220 : vector<8x32xf32>
    %222 = vector.broadcast %132 : vector<1x32xf32> to vector<8x32xf32>
    %223 = arith.mulf %221, %222 : vector<8x32xf32>
    %224 = vector.broadcast %133 : vector<1x32xf32> to vector<8x32xf32>
    %225 = arith.addf %223, %224 : vector<8x32xf32>
    %c0_83 = arith.constant 0 : index
    %c0_84 = arith.constant 0 : index
    %c0_85 = arith.constant 0 : index
    %226 = vector.load %arg10[%c0_83, %c0_84, %c0_85] : memref<1x8x32xf32, #tpu.memory_space<vmem>>, vector<1x8x32xf32>
    %227 = vector.shape_cast %226 : vector<1x8x32xf32> to vector<8x32xf32>
    %228 = vector.shape_cast %225 : vector<8x32xf32> to vector<1x8x32xf32>
    tpu.vector_store %arg10[%c0_83, %c0_84, %c0_85], %228 {strides = array<i32>} : memref<1x8x32xf32, #tpu.memory_space<vmem>>, vector<1x8x32xf32>,
    return
  }
  func.func @transform_0(%arg0: i32) -> (i32, i32, i32) {
    %c0_i32 = arith.constant 0 : i32
    %c0_i32_0 = arith.constant 0 : i32
    %c0_i32_1 = arith.constant 0 : i32
    return %arg0, %c0_i32, %c0_i32_0 : i32, i32, i32
  }
  func.func @transform_1(%arg0: i32) -> (i32, i32, i32) {
    %c0_i32 = arith.constant 0 : i32
    %c0_i32_0 = arith.constant 0 : i32
    %c0_i32_1 = arith.constant 0 : i32
    return %arg0, %c0_i32, %c0_i32_0 : i32, i32, i32
  }
  func.func @transform_2(%arg0: i32) -> (i32, i32) {
    %c0_i32 = arith.constant 0 : i32
    %c0_i32_0 = arith.constant 0 : i32
    %c0_i32_1 = arith.constant 0 : i32
    return %c0_i32, %c0_i32_0 : i32, i32
  }
  func.func @transform_3(%arg0: i32) -> (i32, i32) {
    %c0_i32 = arith.constant 0 : i32
    %c0_i32_0 = arith.constant 0 : i32
    %c0_i32_1 = arith.constant 0 : i32
    return %c0_i32, %c0_i32_0 : i32, i32
  }
  func.func @transform_4(%arg0: i32) -> (i32, i32, i32) {
    %c0_i32 = arith.constant 0 : i32
    %c0_i32_0 = arith.constant 0 : i32
    %c0_i32_1 = arith.constant 0 : i32
    %c0_i32_2 = arith.constant 0 : i32
    return %c0_i32, %c0_i32_0, %c0_i32_1 : i32, i32, i32
  }
  func.func @transform_5(%arg0: i32) -> (i32, i32, i32) {
    %c0_i32 = arith.constant 0 : i32
    %c0_i32_0 = arith.constant 0 : i32
    %c0_i32_1 = arith.constant 0 : i32
    %c0_i32_2 = arith.constant 0 : i32
    return %c0_i32, %c0_i32_0, %c0_i32_1 : i32, i32, i32
  }
  func.func @transform_6(%arg0: i32) -> (i32, i32, i32) {
    %c0_i32 = arith.constant 0 : i32
    %c0_i32_0 = arith.constant 0 : i32
    %c0_i32_1 = arith.constant 0 : i32
    %c0_i32_2 = arith.constant 0 : i32
    return %c0_i32, %c0_i32_0, %c0_i32_1 : i32, i32, i32
  }
  func.func @transform_7(%arg0: i32) -> (i32, i32, i32) {
    %c0_i32 = arith.constant 0 : i32
    %c0_i32_0 = arith.constant 0 : i32
    %c0_i32_1 = arith.constant 0 : i32
    %c0_i32_2 = arith.constant 0 : i32
    return %c0_i32, %c0_i32_0, %c0_i32_1 : i32, i32, i32
  }
  func.func @transform_8(%arg0: i32) -> (i32, i32, i32) {
    %c0_i32 = arith.constant 0 : i32
    %c0_i32_0 = arith.constant 0 : i32
    %c0_i32_1 = arith.constant 0 : i32
    %c0_i32_2 = arith.constant 0 : i32
    return %c0_i32, %c0_i32_0, %c0_i32_1 : i32, i32, i32
  }
  func.func @transform_9(%arg0: i32) -> (i32, i32, i32) {
    %c0_i32 = arith.constant 0 : i32
    %c0_i32_0 = arith.constant 0 : i32
    %c0_i32_1 = arith.constant 0 : i32
    return %arg0, %c0_i32, %c0_i32_0 : i32, i32, i32
  }
}

</mosaic_0001>

<llo_original>
// kernel: roberta_partial_encoder.1
$region0: #{roberta_partial_encoder.1}
  #allocation0 [shape = 'u32[]', space=smem, size = 0x4, offset = 0x4, fixed_abs, tag = 'smem constant byte address 0x4 - core index']
  #allocation1 [shape = 'u32[144,128]{1,0:T(1,128)}', space=vmem, size = 0x12000, scoped, tag = 'internal scratch']
  %s0 = inlined_call_operand.vmem [shape: f32[2,8,32], index: 0, kind: input, shape index: {}]
  %s1 = inlined_call_operand.vmem [shape: f32[2,1,32], index: 1, kind: input, shape index: {}]
  %s2 = inlined_call_operand.vmem [shape: f32[32,32], index: 2, kind: input, shape index: {}, may-alias: {2,3}]
  %s3 = inlined_call_operand.vmem [shape: f32[32,32], index: 3, kind: input, shape index: {}, may-alias: {2,3}]
  %s4 = inlined_call_operand.vmem [shape: f32[2,32,96], index: 4, kind: input, shape index: {}]
  %s5 = inlined_call_operand.vmem [shape: f32[2,32,32], index: 5, kind: input, shape index: {}]
  %s6 = inlined_call_operand.vmem [shape: f32[2,32,128], index: 6, kind: input, shape index: {}]
  %s7 = inlined_call_operand.vmem [shape: f32[2,128,32], index: 7, kind: input, shape index: {}]
  %s8 = inlined_call_operand.vmem [shape: f32[2,8,128], index: 8, kind: input, shape index: {}]
  %s9 = inlined_call_operand.hbm [shape: f32[2,8,32], index: 9, kind: output, shape index: {}]
  %s10 = sld [smem:[#allocation0]]
  $region69: #{roberta_partial_encoder.1} parent=0
    _
  %s12 = ssub.s32 1, %s10
  %s13 = scalar_select 0, %s12, %s10
  $region1: #{roberta_partial_encoder.1} parent=0
    #allocation2 [shape = 'u8[8192]{0}', space=vmem, size = 0x2000, scoped, tag = 'output window, operand 0']
    #allocation3 [shape = 's32[2]{0}', space=sflag, size = 0x8, scoped, tag = 'scoped memory for roberta_partial_encoder.1']
    %14 = vsyncpa [#allocation3], 0
    %s15 = scalar_lea.sflag [#allocation3], 1
    %16 = vsyncpa %s15, 0
    loop: start=0, step=1, limit=4
    $region2: #{roberta_partial_encoder.1} parent=1 // loop_pre_header
      _
    $region3: #{roberta_partial_encoder.1} parent=1 // loop_header
      %s18 = sphi 0, %s22
      %p19 = scmp.ge.s32.totalorder %s18, 4
      %s28 = sphi 0, %s30
      %s31 = sphi 0, %s28
      %s32 = sphi 0, %s31
      %s48 = sphi 0, %s32
      %s54 = sphi 0, %s56
      %s57 = sphi 0, %s54
      %s58 = sphi 0, %s57
      %s74 = sphi 0, %s58
      %s78 = sphi 0, %s78
      %s80 = sphi 0, %s78
      %s81 = sphi 0, %s80
      %s95 = sphi 0, %s81
      %s99 = sphi 0, %s99
      %s101 = sphi 0, %s99
      %s102 = sphi 0, %s101
      %s116 = sphi 0, %s102
      %s120 = sphi 0, %s120
      %s122 = sphi 0, %s120
      %s123 = sphi 0, %s122
      %s137 = sphi 0, %s123
      %s141 = sphi 0, %s141
      %s143 = sphi 0, %s141
      %s144 = sphi 0, %s143
      %s158 = sphi 0, %s144
      %s162 = sphi 0, %s162
      %s164 = sphi 0, %s162
      %s165 = sphi 0, %s164
      %s179 = sphi 0, %s165
      %s183 = sphi 0, %s183
      %s185 = sphi 0, %s183
      %s186 = sphi 0, %s185
      %s200 = sphi 0, %s186
      %s204 = sphi 0, %s204
      %s206 = sphi 0, %s204
      %s207 = sphi 0, %s206
      %s221 = sphi 0, %s207
      %s227 = sphi 0, %s229
      %s230 = sphi 0, %s227
      %s231 = sphi 0, %s230
      %s247 = sphi 0, %s231
    $region4: #{roberta_partial_encoder.1} parent=1 // loop_header_branch
      %21 = sbr.rel (%p19) target = $region8
    $region5: #{roberta_partial_encoder.1} parent=1 // loop_body
      %s23 = ssub.s32 %s18, 1
      %s24 = ssub.s32 %s18, 2
      %s25 = sadd.s32 %s18, 1
      %s26 = ssub.s32 %s18, %s25
      %p27 = scmp.eq.s32.totalorder %s26, 0
      %s29 = sadd.s32 %s28, 1
      %s30 = scalar_select %p27, %s28, %s29
      %p33 = pneg %p27
      %p34 = scmp.eq.s32.totalorder %s18, 1
      %p35 = por %p33, %p34
      %p36 = scmp.ne.s32.totalorder %s28, %s31
      %p37 = scmp.eq.s32.totalorder %s18, 0
      %p38 = por %p36, %p37
      %p39 = scmp.ne.s32.totalorder %s28, %s31
      %p40 = scmp.eq.s32.totalorder %s23, 1
      %p41 = por %p39, %p40
      %p42 = scmp.ne.s32.totalorder %s31, %s32
      %p43 = scmp.eq.s32.totalorder %s23, 0
      %p44 = por %p42, %p43
      %p45 = scmp.ne.s32.totalorder %s31, %s32
      %p46 = scmp.eq.s32.totalorder %s24, 1
      %p47 = por %p45, %p46
      %p49 = scmp.ne.s32.totalorder %s32, %s48
      %p50 = scmp.eq.s32.totalorder %s24, 0
      %p51 = por %p49, %p50
      %s52 = ssub.s32 %s18, %s25
      %p53 = scmp.eq.s32.totalorder %s52, 0
      %s55 = sadd.s32 %s54, 1
      %s56 = scalar_select %p53, %s54, %s55
      %p59 = pneg %p53
      %p60 = scmp.eq.s32.totalorder %s18, 1
      %p61 = por %p59, %p60
      %p62 = scmp.ne.s32.totalorder %s54, %s57
      %p63 = scmp.eq.s32.totalorder %s18, 0
      %p64 = por %p62, %p63
      %p65 = scmp.ne.s32.totalorder %s54, %s57
      %p66 = scmp.eq.s32.totalorder %s23, 1
      %p67 = por %p65, %p66
      %p68 = scmp.ne.s32.totalorder %s57, %s58
      %p69 = scmp.eq.s32.totalorder %s23, 0
      %p70 = por %p68, %p69
      %p71 = scmp.ne.s32.totalorder %s57, %s58
      %p72 = scmp.eq.s32.totalorder %s24, 1
      %p73 = por %p71, %p72
      %p75 = scmp.ne.s32.totalorder %s58, %s74
      %p76 = scmp.eq.s32.totalorder %s24, 0
      %p77 = por %p75, %p76
      %s79 = sadd.s32 %s78, 1
      %p82 = scmp.eq.s32.totalorder %s18, 1
      %p83 = scmp.ne.s32.totalorder %s78, %s80
      %p84 = scmp.eq.s32.totalorder %s18, 0
      %p85 = por %p83, %p84
      %p86 = scmp.ne.s32.totalorder %s78, %s80
      %p87 = scmp.eq.s32.totalorder %s23, 1
      %p88 = por %p86, %p87
      %p89 = scmp.ne.s32.totalorder %s80, %s81
      %p90 = scmp.eq.s32.totalorder %s23, 0
      %p91 = por %p89, %p90
      %p92 = scmp.ne.s32.totalorder %s80, %s81
      %p93 = scmp.eq.s32.totalorder %s24, 1
      %p94 = por %p92, %p93
      %p96 = scmp.ne.s32.totalorder %s81, %s95
      %p97 = scmp.eq.s32.totalorder %s24, 0
      %p98 = por %p96, %p97
      %s100 = sadd.s32 %s99, 1
      %p103 = scmp.eq.s32.totalorder %s18, 1
      %p104 = scmp.ne.s32.totalorder %s99, %s101
      %p105 = scmp.eq.s32.totalorder %s18, 0
      %p106 = por %p104, %p105
      %p107 = scmp.ne.s32.totalorder %s99, %s101
      %p108 = scmp.eq.s32.totalorder %s23, 1
      %p109 = por %p107, %p108
      %p110 = scmp.ne.s32.totalorder %s101, %s102
      %p111 = scmp.eq.s32.totalorder %s23, 0
      %p112 = por %p110, %p111
      %p113 = scmp.ne.s32.totalorder %s101, %s102
      %p114 = scmp.eq.s32.totalorder %s24, 1
      %p115 = por %p113, %p114
      %p117 = scmp.ne.s32.totalorder %s102, %s116
      %p118 = scmp.eq.s32.totalorder %s24, 0
      %p119 = por %p117, %p118
      %s121 = sadd.s32 %s120, 1
      %p124 = scmp.eq.s32.totalorder %s18, 1
      %p125 = scmp.ne.s32.totalorder %s120, %s122
      %p126 = scmp.eq.s32.totalorder %s18, 0
      %p127 = por %p125, %p126
      %p128 = scmp.ne.s32.totalorder %s120, %s122
      %p129 = scmp.eq.s32.totalorder %s23, 1
      %p130 = por %p128, %p129
      %p131 = scmp.ne.s32.totalorder %s122, %s123
      %p132 = scmp.eq.s32.totalorder %s23, 0
      %p133 = por %p131, %p132
      %p134 = scmp.ne.s32.totalorder %s122, %s123
      %p135 = scmp.eq.s32.totalorder %s24, 1
      %p136 = por %p134, %p135
      %p138 = scmp.ne.s32.totalorder %s123, %s137
      %p139 = scmp.eq.s32.totalorder %s24, 0
      %p140 = por %p138, %p139
      %s142 = sadd.s32 %s141, 1
      %p145 = scmp.eq.s32.totalorder %s18, 1
      %p146 = scmp.ne.s32.totalorder %s141, %s143
      %p147 = scmp.eq.s32.totalorder %s18, 0
      %p148 = por %p146, %p147
      %p149 = scmp.ne.s32.totalorder %s141, %s143
      %p150 = scmp.eq.s32.totalorder %s23, 1
      %p151 = por %p149, %p150
      %p152 = scmp.ne.s32.totalorder %s143, %s144
      %p153 = scmp.eq.s32.totalorder %s23, 0
      %p154 = por %p152, %p153
      %p155 = scmp.ne.s32.totalorder %s143, %s144
      %p156 = scmp.eq.s32.totalorder %s24, 1
      %p157 = por %p155, %p156
      %p159 = scmp.ne.s32.totalorder %s144, %s158
      %p160 = scmp.eq.s32.totalorder %s24, 0
      %p161 = por %p159, %p160
      %s163 = sadd.s32 %s162, 1
      %p166 = scmp.eq.s32.totalorder %s18, 1
      %p167 = scmp.ne.s32.totalorder %s162, %s164
      %p168 = scmp.eq.s32.totalorder %s18, 0
      %p169 = por %p167, %p168
      %p170 = scmp.ne.s32.totalorder %s162, %s164
      %p171 = scmp.eq.s32.totalorder %s23, 1
      %p172 = por %p170, %p171
      %p173 = scmp.ne.s32.totalorder %s164, %s165
      %p174 = scmp.eq.s32.totalorder %s23, 0
      %p175 = por %p173, %p174
      %p176 = scmp.ne.s32.totalorder %s164, %s165
      %p177 = scmp.eq.s32.totalorder %s24, 1
      %p178 = por %p176, %p177
      %p180 = scmp.ne.s32.totalorder %s165, %s179
      %p181 = scmp.eq.s32.totalorder %s24, 0
      %p182 = por %p180, %p181
      %s184 = sadd.s32 %s183, 1
      %p187 = scmp.eq.s32.totalorder %s18, 1
      %p188 = scmp.ne.s32.totalorder %s183, %s185
      %p189 = scmp.eq.s32.totalorder %s18, 0
      %p190 = por %p188, %p189
      %p191 = scmp.ne.s32.totalorder %s183, %s185
      %p192 = scmp.eq.s32.totalorder %s23, 1
      %p193 = por %p191, %p192
      %p194 = scmp.ne.s32.totalorder %s185, %s186
      %p195 = scmp.eq.s32.totalorder %s23, 0
      %p196 = por %p194, %p195
      %p197 = scmp.ne.s32.totalorder %s185, %s186
      %p198 = scmp.eq.s32.totalorder %s24, 1
      %p199 = por %p197, %p198
      %p201 = scmp.ne.s32.totalorder %s186, %s200
      %p202 = scmp.eq.s32.totalorder %s24, 0
      %p203 = por %p201, %p202
      %s205 = sadd.s32 %s204, 1
      %p208 = scmp.eq.s32.totalorder %s18, 1
      %p209 = scmp.ne.s32.totalorder %s204, %s206
      %p210 = scmp.eq.s32.totalorder %s18, 0
      %p211 = por %p209, %p210
      %p212 = scmp.ne.s32.totalorder %s204, %s206
      %p213 = scmp.eq.s32.totalorder %s23, 1
      %p214 = por %p212, %p213
      %p215 = scmp.ne.s32.totalorder %s206, %s207
      %p216 = scmp.eq.s32.totalorder %s23, 0
      %p217 = por %p215, %p216
      %p218 = scmp.ne.s32.totalorder %s206, %s207
      %p219 = scmp.eq.s32.totalorder %s24, 1
      %p220 = por %p218, %p219
      %p222 = scmp.ne.s32.totalorder %s207, %s221
      %p223 = scmp.eq.s32.totalorder %s24, 0
      %p224 = por %p222, %p223
      %s225 = ssub.s32 %s18, %s25
      %p226 = scmp.eq.s32.totalorder %s225, 0
      %s228 = sadd.s32 %s227, 1
      %s229 = scalar_select %p226, %s227, %s228
      %p232 = pneg %p226
      %p233 = scmp.eq.s32.totalorder %s18, 1
      %p234 = por %p232, %p233
      %p235 = scmp.ne.s32.totalorder %s227, %s230
      %p236 = scmp.eq.s32.totalorder %s18, 0
      %p237 = por %p235, %p236
      %p238 = scmp.ne.s32.totalorder %s227, %s230
      %p239 = scmp.eq.s32.totalorder %s23, 1
      %p240 = por %p238, %p239
      %p241 = scmp.ne.s32.totalorder %s230, %s231
      %p242 = scmp.eq.s32.totalorder %s23, 0
      %p243 = por %p241, %p242
      %p244 = scmp.ne.s32.totalorder %s230, %s231
      %p245 = scmp.eq.s32.totalorder %s24, 1
      %p246 = por %p244, %p245
      %p248 = scmp.ne.s32.totalorder %s231, %s247
      %p249 = scmp.eq.s32.totalorder %s24, 0
      %p250 = por %p248, %p249
      %p251 = scmp.le.s32.totalorder 1, %s18
      %p252 = scmp.lt.s32.totalorder %s18, 3
      %p253 = pnand %p251, %p252
      %p254 = pneg %p253
      // Predicated region
      $region9: #{roberta_partial_encoder.1} parent=5 // pred_check
        _
      $region10: #{roberta_partial_encoder.1} parent=5 // pred_check_branch
        %256 = sbr.rel (%p253) target = $region12
      $region11: #{roberta_partial_encoder.1} parent=5 // pred_region
        %s257 = ssub.s32 %s18, 1
        // Predicated region
        $region13: #{roberta_partial_encoder.1} parent=11 // pred_check
          %p258 = pneg %p91
        $region14: #{roberta_partial_encoder.1} parent=11 // pred_check_branch
          %260 = sbr.rel (%p258) target = $region16
        $region15: #{roberta_partial_encoder.1} parent=11 // pred_region
          _
        $region16: #{roberta_partial_encoder.1} parent=11 // pred_fallthru
          _
        // Predicated region
        $region17: #{roberta_partial_encoder.1} parent=11 // pred_check
          %p261 = pneg %p112
        $region18: #{roberta_partial_encoder.1} parent=11 // pred_check_branch
          %263 = sbr.rel (%p261) target = $region20
        $region19: #{roberta_partial_encoder.1} parent=11 // pred_region
          _
        $region20: #{roberta_partial_encoder.1} parent=11 // pred_fallthru
          _
        // Predicated region
        $region21: #{roberta_partial_encoder.1} parent=11 // pred_check
          %p264 = pneg %p133
        $region22: #{roberta_partial_encoder.1} parent=11 // pred_check_branch
          %266 = sbr.rel (%p264) target = $region24
        $region23: #{roberta_partial_encoder.1} parent=11 // pred_region
          _
        $region24: #{roberta_partial_encoder.1} parent=11 // pred_fallthru
          _
        // Predicated region
        $region25: #{roberta_partial_encoder.1} parent=11 // pred_check
          %p267 = pneg %p154
        $region26: #{roberta_partial_encoder.1} parent=11 // pred_check_branch
          %269 = sbr.rel (%p267) target = $region28
        $region27: #{roberta_partial_encoder.1} parent=11 // pred_region
          _
        $region28: #{roberta_partial_encoder.1} parent=11 // pred_fallthru
          _
        // Predicated region
        $region29: #{roberta_partial_encoder.1} parent=11 // pred_check
          %p270 = pneg %p175
        $region30: #{roberta_partial_encoder.1} parent=11 // pred_check_branch
          %272 = sbr.rel (%p270) target = $region32
        $region31: #{roberta_partial_encoder.1} parent=11 // pred_region
          _
        $region32: #{roberta_partial_encoder.1} parent=11 // pred_fallthru
          _
        // Predicated region
        $region33: #{roberta_partial_encoder.1} parent=11 // pred_check
          %p273 = pneg %p196
        $region34: #{roberta_partial_encoder.1} parent=11 // pred_check_branch
          %275 = sbr.rel (%p273) target = $region36
        $region35: #{roberta_partial_encoder.1} parent=11 // pred_region
          _
        $region36: #{roberta_partial_encoder.1} parent=11 // pred_fallthru
          _
        // Predicated region
        $region37: #{roberta_partial_encoder.1} parent=11 // pred_check
          %p276 = pneg %p217
        $region38: #{roberta_partial_encoder.1} parent=11 // pred_check_branch
          %278 = sbr.rel (%p276) target = $region40
        $region39: #{roberta_partial_encoder.1} parent=11 // pred_region
          _
        $region40: #{roberta_partial_encoder.1} parent=11 // pred_fallthru
          _
      $region12: #{roberta_partial_encoder.1} parent=5 // pred_fallthru
        _
      %p279 = scmp.lt.s32.totalorder %s18, 2
      // Predicated region
      $region41: #{roberta_partial_encoder.1} parent=5 // pred_check
        %p280 = pneg %p279
      $region42: #{roberta_partial_encoder.1} parent=5 // pred_check_branch
        %282 = sbr.rel (%p280) target = $region44
      $region43: #{roberta_partial_encoder.1} parent=5 // pred_region
        // Predicated region
        $region45: #{roberta_partial_encoder.1} parent=43 // pred_check
          %p283 = pneg %p38
        $region46: #{roberta_partial_encoder.1} parent=43 // pred_check_branch
          %285 = sbr.rel (%p283) target = $region48
        $region47: #{roberta_partial_encoder.1} parent=43 // pred_region
          %p286 = scmp.lt.s32.totalorder %s18, 1
          %s287 = scalar_select %p286, %s18, 1
          %s288 = smul.addr %s287, 8
          %s289 = scalar_lea.vmem %s0, %s288
        $region48: #{roberta_partial_encoder.1} parent=43 // pred_fallthru
          _
        // Predicated region
        $region49: #{roberta_partial_encoder.1} parent=43 // pred_check
          %p290 = pneg %p64
        $region50: #{roberta_partial_encoder.1} parent=43 // pred_check_branch
          %292 = sbr.rel (%p290) target = $region52
        $region51: #{roberta_partial_encoder.1} parent=43 // pred_region
          %p293 = scmp.lt.s32.totalorder %s18, 1
          %s294 = scalar_select %p293, %s18, 1
          %s295 = scalar_lea.vmem %s1, %s294
        $region52: #{roberta_partial_encoder.1} parent=43 // pred_fallthru
          _
      $region44: #{roberta_partial_encoder.1} parent=5 // pred_fallthru
        _
      %p296 = scmp.le.s32.totalorder 1, %s18
      %p297 = scmp.lt.s32.totalorder %s18, 3
      %p298 = pnand %p296, %p297
      %p299 = pneg %p298
      // Predicated region
      $region53: #{roberta_partial_encoder.1} parent=5 // pred_check
        _
      $region54: #{roberta_partial_encoder.1} parent=5 // pred_check_branch
        %301 = sbr.rel (%p298) target = $region56
      $region55: #{roberta_partial_encoder.1} parent=5 // pred_region
        %s302 = ssub.s32 %s18, 1
        %p303 = scmp.lt.s32.totalorder %s23, 1
        %s304 = scalar_select %p303, %s23, 1
        %s305 = smul.addr %s304, 8
        %s306 = scalar_lea.vmem %s0, %s305
        %p307 = pneg %p44
        %p308 = pneg %p41
        %p309 = scmp.lt.s32.totalorder %s23, 1
        %s310 = scalar_select %p309, %s23, 1
        %s311 = scalar_lea.vmem %s1, %s310
        %p312 = pneg %p70
        %p313 = pneg %p67
        %p314 = pneg %p91
        %p315 = pneg %p88
        %p316 = pneg %p112
        %p317 = pneg %p109
        %p318 = pneg %p133
        %p319 = pneg %p130
        %p320 = pneg %p154
        %p321 = pneg %p151
        %p322 = pneg %p175
        %p323 = pneg %p172
        %p324 = pneg %p196
        %p325 = pneg %p193
        %p326 = pneg %p217
        %p327 = pneg %p214
        %p328 = pneg %p243
        %p329 = pneg %p240
        %s330 = sand.u32 %s230, 1
        %s331 = scalar_lea.sflag [#allocation3], %s330
        %s332 = sand.u32 %s230, 1
        %s333 = smul.addr %s332, 8
        %s334 = scalar_lea.vmem [#allocation2], %s333
        %p335 = scmp.lt.s32.totalorder %s23, 1
        %s336 = scalar_select %p335, %s23, 1
        %s337 = smul.addr %s336, 8
        %s338 = scalar_lea.vmem %s0, %s337
        %p339 = scmp.lt.s32.totalorder %s23, 1
        %s340 = scalar_select %p339, %s23, 1
        %s341 = scalar_lea.vmem %s1, %s340
        %v342 = vld [vmem:[%s338] sm:$0xff]
        %v343 = vld [vmem:[%s341] sm:$0x1]
        %v344 = vld [vmem:[%s2] sm:$0xff]
        %v345 = vld [vmem:[%s2 + $0x8] sm:$0xff]
        %v346 = vld [vmem:[%s2 + $0x10] sm:$0xff]
        %v347 = vld [vmem:[%s2 + $0x18] sm:$0xff]
        %v348 = vld [vmem:[%s3] sm:$0xff]
        %v349 = vld [vmem:[%s3 + $0x8] sm:$0xff]
        %v350 = vld [vmem:[%s3 + $0x10] sm:$0xff]
        %v351 = vld [vmem:[%s3 + $0x18] sm:$0xff]
        %v352 = vld [vmem:[%s4] sm:$0xff]
        %v353 = vld [vmem:[%s4 + $0x8] sm:$0xff]
        %v354 = vld [vmem:[%s4 + $0x10] sm:$0xff]
        %v355 = vld [vmem:[%s4 + $0x18] sm:$0xff]
        %v356 = vld [vmem:[%s5] sm:$0xff]
        %v357 = vld [vmem:[%s5 + $0x8] sm:$0xff]
        %v358 = vld [vmem:[%s5 + $0x10] sm:$0xff]
        %v359 = vld [vmem:[%s5 + $0x18] sm:$0xff]
        %v360 = vld [vmem:[%s6] sm:$0xff]
        %v361 = vld [vmem:[%s6 + $0x8] sm:$0xff]
        %v362 = vld [vmem:[%s6 + $0x10] sm:$0xff]
        %v363 = vld [vmem:[%s6 + $0x18] sm:$0xff]
        %v364 = vld [vmem:[%s7] sm:$0xff]
        %v365 = vld [vmem:[%s7 + $0x8] sm:$0xff]
        %v366 = vld [vmem:[%s7 + $0x10] sm:$0xff]
        %v367 = vld [vmem:[%s7 + $0x18] sm:$0xff]
        %v368 = vld [vmem:[%s7 + $0x20] sm:$0xff]
        %v369 = vld [vmem:[%s7 + $0x28] sm:$0xff]
        %v370 = vld [vmem:[%s7 + $0x30] sm:$0xff]
        %v371 = vld [vmem:[%s7 + $0x38] sm:$0xff]
        %v372 = vld [vmem:[%s7 + $0x40] sm:$0xff]
        %v373 = vld [vmem:[%s7 + $0x48] sm:$0xff]
        %v374 = vld [vmem:[%s7 + $0x50] sm:$0xff]
        %v375 = vld [vmem:[%s7 + $0x58] sm:$0xff]
        %v376 = vld [vmem:[%s7 + $0x60] sm:$0xff]
        %v377 = vld [vmem:[%s7 + $0x68] sm:$0xff]
        %v378 = vld [vmem:[%s7 + $0x70] sm:$0xff]
        %v379 = vld [vmem:[%s7 + $0x78] sm:$0xff]
        %v380 = vld [vmem:[%s8] sm:$0xff]
        %v381 = vlaneseq
        %v382 = vshrl.u32 %v381, 7
        %v383 = vsub.s32 0, %v382
        %v384 = vrot.slane %v380, %v383
        %vm385 = vcmask 261120
        %v387 = vsel %vm385, %v342, 0
        %389 = vmatprep.subr.mxu0 0.0
        %390 = vmatpush1.msra.mxu0 %v352
        %391 = vmatprep.subr.mxu0 0.0
        %392 = vmatpush1.msra.mxu0 %v353
        %393 = vmatprep.subr.mxu0 0.0
        %394 = vmatpush1.msra.mxu0 %v354
        %395 = vmatprep.subr.mxu0 0.0
        %396 = vmatpush1.msra.mxu0 %v355
        %397 = vmatprep.subr.mxu0 0.0
        %398 = vmatpush1.msra.mxu0 0.0
        %399 = vmatprep.subr.mxu0 0.0
        %400 = vmatpush1.msra.mxu0 0.0
        %401 = vmatprep.subr.mxu0 0.0
        %402 = vmatpush1.msra.mxu0 0.0
        %403 = vmatprep.subr.mxu0 0.0
        %404 = vmatpush1.msra.mxu0 0.0
        %405 = vmatprep.subr.mxu0 0.0
        %406 = vmatpush1.msra.mxu0 0.0
        %407 = vmatprep.subr.mxu0 0.0
        %408 = vmatpush1.msra.mxu0 0.0
        %409 = vmatprep.subr.mxu0 0.0
        %410 = vmatpush1.msra.mxu0 0.0
        %411 = vmatprep.subr.mxu0 0.0
        %412 = vmatpush1.msra.mxu0 0.0
        %413 = vmatprep.subr.mxu0 0.0
        %414 = vmatpush1.msra.mxu0 0.0
        %415 = vmatprep.subr.mxu0 0.0
        %416 = vmatpush1.msra.mxu0 0.0
        %417 = vmatprep.subr.mxu0 0.0
        %418 = vmatpush1.msra.mxu0 0.0
        %419 = vmatprep.subr.mxu0 0.0
        %420 = vmatpush1.msra.mxu0 0.0
        %421 = vmatprep.subr.mxu0 0.0
        %422 = vmatpush1.msra.mxu0 0.0
        %423 = vmatprep.subr.mxu0 0.0
        %424 = vmatpush1.msra.mxu0 0.0
        %425 = vmatprep.subr.mxu0 0.0
        %426 = vmatpush1.msra.mxu0 0.0
        %427 = vmatprep.subr.mxu0 0.0
        %428 = vmatpush1.msra.mxu0 0.0
        %429 = vmatprep.subr.mxu0 0.0
        %430 = vmatpush1.msra.mxu0 0.0
        %431 = vmatprep.subr.mxu0 0.0
        %432 = vmatpush1.msra.mxu0 0.0
        %433 = vmatprep.subr.mxu0 0.0
        %434 = vmatpush1.msra.mxu0 0.0
        %435 = vmatprep.subr.mxu0 0.0
        %436 = vmatpush1.msra.mxu0 0.0
        %437 = vmatprep.subr.mxu0 0.0
        %438 = vmatpush1.msra.mxu0 0.0
        %439 = vmatprep.subr.mxu0 0.0
        %440 = vmatpush1.msra.mxu0 0.0
        %441 = vmatprep.subr.mxu0 0.0
        %442 = vmatpush1.msra.mxu0 0.0
        %443 = vmatprep.subr.mxu0 0.0
        %444 = vmatpush1.msra.mxu0 0.0
        %445 = vmatprep.subr.mxu0 0.0
        %446 = vmatpush1.msra.mxu0 0.0
        %447 = vmatprep.subr.mxu0 0.0
        %448 = vmatpush1.msra.mxu0 0.0
        %449 = vmatprep.subr.mxu0 0.0
        %450 = vmatpush1.msra.mxu0 0.0
        %451 = vmatprep.subr.mxu0 0.0
        %452 = vmatpush1.msra.mxu0 0.0
        %453 = vmatprep.mubr.f32.mxu0 0.0
        %454 = vmatmul.mubr.f32.gmra.mrb[0].mxu0 %v387
        %v455 = vpop.f32.mrb[0].mxu0
        %v456 = vadd.f32 %v384, %v455
        %v457 = vpop.f32.mrb[0].mxu0
        %458 = vdwg.mxu0
        %v459 = vmul.f32 %v456, 0.35355338
        %464 = vrot.lane.b32.xlu0 %v344, 32
        %v465 = vpop.permute.xlu0 %464
        %466 = vrot.lane.b32.xlu0 %v345, 32
        %v467 = vpop.permute.xlu0 %466
        %468 = vrot.lane.b32.xlu0 %v346, 32
        %v469 = vpop.permute.xlu0 %468
        %470 = vrot.lane.b32.xlu0 %v347, 32
        %v471 = vpop.permute.xlu0 %470
        %v476 = vmul.f32 %v456, %v465
        %v477 = vmul.f32 %v456, %v467
        %v478 = vmul.f32 %v456, %v469
        %v479 = vmul.f32 %v456, %v471
        %480 = vrot.lane.b32.xlu0 %v344, 64
        %v481 = vpop.permute.xlu0 %480
        %482 = vrot.lane.b32.xlu0 %v345, 64
        %v483 = vpop.permute.xlu0 %482
        %484 = vrot.lane.b32.xlu0 %v346, 64
        %v485 = vpop.permute.xlu0 %484
        %486 = vrot.lane.b32.xlu0 %v347, 64
        %v487 = vpop.permute.xlu0 %486
        %v492 = vmul.f32 %v456, %v481
        %v493 = vmul.f32 %v456, %v483
        %v494 = vmul.f32 %v456, %v485
        %v495 = vmul.f32 %v456, %v487
        %v497 = vlaneseq
        %v498 = vshrl.u32 %v497, 7
        %v499 = vsub.s32 0, %v498
        %v500 = vrot.slane %v343, %v499
        %506 = vrot.lane.b32.xlu0 %v476, 96
        %v507 = vpop.permute.xlu0 %506
        %508 = vrot.lane.b32.xlu0 %v477, 96
        %v509 = vpop.permute.xlu0 %508
        %510 = vrot.lane.b32.xlu0 %v478, 96
        %v511 = vpop.permute.xlu0 %510
        %512 = vrot.lane.b32.xlu0 %v479, 96
        %v513 = vpop.permute.xlu0 %512
        %v515 = vsel %vm385, %v459, 0
        %v517 = vsel %vm385, %v507, 0
        %v519 = vsel %vm385, %v509, 0
        %v521 = vsel %vm385, %v511, 0
        %v523 = vsel %vm385, %v513, 0
        %525 = vmatprep.subr.mxu0 0.0
        %526 = vmatpush1.xpose.msra.mxu0 %v517
        %527 = vmatprep.subr.mxu0 0.0
        %528 = vmatpush1.xpose.msra.mxu0 %v519
        %529 = vmatprep.subr.mxu0 0.0
        %530 = vmatpush1.xpose.msra.mxu0 %v521
        %531 = vmatprep.subr.mxu0 0.0
        %532 = vmatpush1.xpose.msra.mxu0 %v523
        %533 = vmatprep.subr.mxu0 0.0
        %534 = vmatpush1.xpose.msra.mxu0 0.0
        %535 = vmatprep.subr.mxu0 0.0
        %536 = vmatpush1.xpose.msra.mxu0 0.0
        %537 = vmatprep.subr.mxu0 0.0
        %538 = vmatpush1.xpose.msra.mxu0 0.0
        %539 = vmatprep.subr.mxu0 0.0
        %540 = vmatpush1.xpose.msra.mxu0 0.0
        %541 = vmatprep.subr.mxu0 0.0
        %542 = vmatpush1.xpose.msra.mxu0 0.0
        %543 = vmatprep.subr.mxu0 0.0
        %544 = vmatpush1.xpose.msra.mxu0 0.0
        %545 = vmatprep.subr.mxu0 0.0
        %546 = vmatpush1.xpose.msra.mxu0 0.0
        %547 = vmatprep.subr.mxu0 0.0
        %548 = vmatpush1.xpose.msra.mxu0 0.0
        %549 = vmatprep.subr.mxu0 0.0
        %550 = vmatpush1.xpose.msra.mxu0 0.0
        %551 = vmatprep.subr.mxu0 0.0
        %552 = vmatpush1.xpose.msra.mxu0 0.0
        %553 = vmatprep.subr.mxu0 0.0
        %554 = vmatpush1.xpose.msra.mxu0 0.0
        %555 = vmatprep.subr.mxu0 0.0
        %556 = vmatpush1.xpose.msra.mxu0 0.0
        %557 = vmatprep.subr.mxu0 0.0
        %558 = vmatpush1.xpose.msra.mxu0 0.0
        %559 = vmatprep.subr.mxu0 0.0
        %560 = vmatpush1.xpose.msra.mxu0 0.0
        %561 = vmatprep.subr.mxu0 0.0
        %562 = vmatpush1.xpose.msra.mxu0 0.0
        %563 = vmatprep.subr.mxu0 0.0
        %564 = vmatpush1.xpose.msra.mxu0 0.0
        %565 = vmatprep.subr.mxu0 0.0
        %566 = vmatpush1.xpose.msra.mxu0 0.0
        %567 = vmatprep.subr.mxu0 0.0
        %568 = vmatpush1.xpose.msra.mxu0 0.0
        %569 = vmatprep.subr.mxu0 0.0
        %570 = vmatpush1.xpose.msra.mxu0 0.0
        %571 = vmatprep.subr.mxu0 0.0
        %572 = vmatpush1.xpose.msra.mxu0 0.0
        %573 = vmatprep.subr.mxu0 0.0
        %574 = vmatpush1.xpose.msra.mxu0 0.0
        %575 = vmatprep.subr.mxu0 0.0
        %576 = vmatpush1.xpose.msra.mxu0 0.0
        %577 = vmatprep.subr.mxu0 0.0
        %578 = vmatpush1.xpose.msra.mxu0 0.0
        %579 = vmatprep.subr.mxu0 0.0
        %580 = vmatpush1.xpose.msra.mxu0 0.0
        %581 = vmatprep.subr.mxu0 0.0
        %582 = vmatpush1.xpose.msra.mxu0 0.0
        %583 = vmatprep.subr.mxu0 0.0
        %584 = vmatpush1.xpose.msra.mxu0 0.0
        %585 = vmatprep.subr.mxu0 0.0
        %586 = vmatpush1.xpose.msra.mxu0 0.0
        %587 = vmatprep.subr.mxu0 0.0
        %588 = vmatpush1.xpose.msra.mxu0 0.0
        %589 = vmatprep.mubr.f32.mxu0 0.0
        %590 = vmatmul.mubr.f32.gmra.mrb[0].mxu0 %v515
        %v591 = vpop.f32.mrb[0].mxu0
        %v592 = vadd.f32 %v500, %v591
        %v593 = vpop.f32.mrb[0].mxu0
        %594 = vdwg.mxu0
        %v595 = vsel %vm385, %v592, -inf
        %596 = vmax.xlane.f32.xlu0 %v595
        %v597 = vpop.xlane.xlu0 %596
        %v598 = vsub.f32 %v592, %v597
        %v599 = vmul.f32 %v598, 1.442695
        %v600 = vpow.pop %v599
        %v602 = vsel %vm385, %v600, 0
        %604 = vmatprep.subr.mxu0 0.0
        %605 = vmatpush1.msra.mxu0 %v348
        %606 = vmatprep.subr.mxu0 0.0
        %607 = vmatpush1.msra.mxu0 %v349
        %608 = vmatprep.subr.mxu0 0.0
        %609 = vmatpush1.msra.mxu0 %v350
        %610 = vmatprep.subr.mxu0 0.0
        %611 = vmatpush1.msra.mxu0 %v351
        %612 = vmatprep.subr.mxu0 0.0
        %613 = vmatpush1.msra.mxu0 0.0
        %614 = vmatprep.subr.mxu0 0.0
        %615 = vmatpush1.msra.mxu0 0.0
        %616 = vmatprep.subr.mxu0 0.0
        %617 = vmatpush1.msra.mxu0 0.0
        %618 = vmatprep.subr.mxu0 0.0
        %619 = vmatpush1.msra.mxu0 0.0
        %620 = vmatprep.subr.mxu0 0.0
        %621 = vmatpush1.msra.mxu0 0.0
        %622 = vmatprep.subr.mxu0 0.0
        %623 = vmatpush1.msra.mxu0 0.0
        %624 = vmatprep.subr.mxu0 0.0
        %625 = vmatpush1.msra.mxu0 0.0
        %626 = vmatprep.subr.mxu0 0.0
        %627 = vmatpush1.msra.mxu0 0.0
        %628 = vmatprep.subr.mxu0 0.0
        %629 = vmatpush1.msra.mxu0 0.0
        %630 = vmatprep.subr.mxu0 0.0
        %631 = vmatpush1.msra.mxu0 0.0
        %632 = vmatprep.subr.mxu0 0.0
        %633 = vmatpush1.msra.mxu0 0.0
        %634 = vmatprep.subr.mxu0 0.0
        %635 = vmatpush1.msra.mxu0 0.0
        %636 = vmatprep.subr.mxu0 0.0
        %637 = vmatpush1.msra.mxu0 0.0
        %638 = vmatprep.subr.mxu0 0.0
        %639 = vmatpush1.msra.mxu0 0.0
        %640 = vmatprep.subr.mxu0 0.0
        %641 = vmatpush1.msra.mxu0 0.0
        %642 = vmatprep.subr.mxu0 0.0
        %643 = vmatpush1.msra.mxu0 0.0
        %644 = vmatprep.subr.mxu0 0.0
        %645 = vmatpush1.msra.mxu0 0.0
        %646 = vmatprep.subr.mxu0 0.0
        %647 = vmatpush1.msra.mxu0 0.0
        %648 = vmatprep.subr.mxu0 0.0
        %649 = vmatpush1.msra.mxu0 0.0
        %650 = vmatprep.subr.mxu0 0.0
        %651 = vmatpush1.msra.mxu0 0.0
        %652 = vmatprep.subr.mxu0 0.0
        %653 = vmatpush1.msra.mxu0 0.0
        %654 = vmatprep.subr.mxu0 0.0
        %655 = vmatpush1.msra.mxu0 0.0
        %656 = vmatprep.subr.mxu0 0.0
        %657 = vmatpush1.msra.mxu0 0.0
        %658 = vmatprep.subr.mxu0 0.0
        %659 = vmatpush1.msra.mxu0 0.0
        %660 = vmatprep.subr.mxu0 0.0
        %661 = vmatpush1.msra.mxu0 0.0
        %662 = vmatprep.subr.mxu0 0.0
        %663 = vmatpush1.msra.mxu0 0.0
        %664 = vmatprep.subr.mxu0 0.0
        %665 = vmatpush1.msra.mxu0 0.0
        %666 = vmatprep.subr.mxu0 0.0
        %667 = vmatpush1.msra.mxu0 0.0
        %668 = vmatprep.mubr.f32.mxu0 0.0
        %669 = vmatmul.mubr.f32.gmra.mrb[0].mxu0 %v602
        %v670 = vpop.f32.mrb[0].mxu0
        %v671 = vadd.f32 0.0, %v670
        %v672 = vpop.f32.mrb[0].mxu0
        %673 = vdwg.mxu0
        %v674 = vrcp.pop %v671
        %v675 = vmul.f32 %v600, %v674
        %680 = vrot.lane.b32.xlu0 %v492, 64
        %v681 = vpop.permute.xlu0 %680
        %682 = vrot.lane.b32.xlu0 %v493, 64
        %v683 = vpop.permute.xlu0 %682
        %684 = vrot.lane.b32.xlu0 %v494, 64
        %v685 = vpop.permute.xlu0 %684
        %686 = vrot.lane.b32.xlu0 %v495, 64
        %v687 = vpop.permute.xlu0 %686
        %v693 = vsel %vm385, %v675, 0
        %695 = vmatprep.subr.mxu0 0.0
        %696 = vmatpush1.msra.mxu0 %v681
        %697 = vmatprep.subr.mxu0 0.0
        %698 = vmatpush1.msra.mxu0 %v683
        %699 = vmatprep.subr.mxu0 0.0
        %700 = vmatpush1.msra.mxu0 %v685
        %701 = vmatprep.subr.mxu0 0.0
        %702 = vmatpush1.msra.mxu0 %v687
        %703 = vmatprep.subr.mxu0 0.0
        %704 = vmatpush1.msra.mxu0 0.0
        %705 = vmatprep.subr.mxu0 0.0
        %706 = vmatpush1.msra.mxu0 0.0
        %707 = vmatprep.subr.mxu0 0.0
        %708 = vmatpush1.msra.mxu0 0.0
        %709 = vmatprep.subr.mxu0 0.0
        %710 = vmatpush1.msra.mxu0 0.0
        %711 = vmatprep.subr.mxu0 0.0
        %712 = vmatpush1.msra.mxu0 0.0
        %713 = vmatprep.subr.mxu0 0.0
        %714 = vmatpush1.msra.mxu0 0.0
        %715 = vmatprep.subr.mxu0 0.0
        %716 = vmatpush1.msra.mxu0 0.0
        %717 = vmatprep.subr.mxu0 0.0
        %718 = vmatpush1.msra.mxu0 0.0
        %719 = vmatprep.subr.mxu0 0.0
        %720 = vmatpush1.msra.mxu0 0.0
        %721 = vmatprep.subr.mxu0 0.0
        %722 = vmatpush1.msra.mxu0 0.0
        %723 = vmatprep.subr.mxu0 0.0
        %724 = vmatpush1.msra.mxu0 0.0
        %725 = vmatprep.subr.mxu0 0.0
        %726 = vmatpush1.msra.mxu0 0.0
        %727 = vmatprep.subr.mxu0 0.0
        %728 = vmatpush1.msra.mxu0 0.0
        %729 = vmatprep.subr.mxu0 0.0
        %730 = vmatpush1.msra.mxu0 0.0
        %731 = vmatprep.subr.mxu0 0.0
        %732 = vmatpush1.msra.mxu0 0.0
        %733 = vmatprep.subr.mxu0 0.0
        %734 = vmatpush1.msra.mxu0 0.0
        %735 = vmatprep.subr.mxu0 0.0
        %736 = vmatpush1.msra.mxu0 0.0
        %737 = vmatprep.subr.mxu0 0.0
        %738 = vmatpush1.msra.mxu0 0.0
        %739 = vmatprep.subr.mxu0 0.0
        %740 = vmatpush1.msra.mxu0 0.0
        %741 = vmatprep.subr.mxu0 0.0
        %742 = vmatpush1.msra.mxu0 0.0
        %743 = vmatprep.subr.mxu0 0.0
        %744 = vmatpush1.msra.mxu0 0.0
        %745 = vmatprep.subr.mxu0 0.0
        %746 = vmatpush1.msra.mxu0 0.0
        %747 = vmatprep.subr.mxu0 0.0
        %748 = vmatpush1.msra.mxu0 0.0
        %749 = vmatprep.subr.mxu0 0.0
        %750 = vmatpush1.msra.mxu0 0.0
        %751 = vmatprep.subr.mxu0 0.0
        %752 = vmatpush1.msra.mxu0 0.0
        %753 = vmatprep.subr.mxu0 0.0
        %754 = vmatpush1.msra.mxu0 0.0
        %755 = vmatprep.subr.mxu0 0.0
        %756 = vmatpush1.msra.mxu0 0.0
        %757 = vmatprep.subr.mxu0 0.0
        %758 = vmatpush1.msra.mxu0 0.0
        %759 = vmatprep.mubr.f32.mxu0 0.0
        %760 = vmatmul.mubr.f32.gmra.mrb[0].mxu0 %v693
        %v761 = vpop.f32.mrb[0].mxu0
        %v762 = vadd.f32 0.0, %v761
        %v763 = vpop.f32.mrb[0].mxu0
        %764 = vdwg.mxu0
        %v765 = vlaneseq
        %v766 = vshrl.u32 %v765, 7
        %v767 = vsub.s32 1, %v766
        %v768 = vrot.slane %v380, %v767
        %v770 = vsel %vm385, %v762, 0
        %772 = vmatprep.subr.mxu0 0.0
        %773 = vmatpush1.msra.mxu0 %v356
        %774 = vmatprep.subr.mxu0 0.0
        %775 = vmatpush1.msra.mxu0 %v357
        %776 = vmatprep.subr.mxu0 0.0
        %777 = vmatpush1.msra.mxu0 %v358
        %778 = vmatprep.subr.mxu0 0.0
        %779 = vmatpush1.msra.mxu0 %v359
        %780 = vmatprep.subr.mxu0 0.0
        %781 = vmatpush1.msra.mxu0 0.0
        %782 = vmatprep.subr.mxu0 0.0
        %783 = vmatpush1.msra.mxu0 0.0
        %784 = vmatprep.subr.mxu0 0.0
        %785 = vmatpush1.msra.mxu0 0.0
        %786 = vmatprep.subr.mxu0 0.0
        %787 = vmatpush1.msra.mxu0 0.0
        %788 = vmatprep.subr.mxu0 0.0
        %789 = vmatpush1.msra.mxu0 0.0
        %790 = vmatprep.subr.mxu0 0.0
        %791 = vmatpush1.msra.mxu0 0.0
        %792 = vmatprep.subr.mxu0 0.0
        %793 = vmatpush1.msra.mxu0 0.0
        %794 = vmatprep.subr.mxu0 0.0
        %795 = vmatpush1.msra.mxu0 0.0
        %796 = vmatprep.subr.mxu0 0.0
        %797 = vmatpush1.msra.mxu0 0.0
        %798 = vmatprep.subr.mxu0 0.0
        %799 = vmatpush1.msra.mxu0 0.0
        %800 = vmatprep.subr.mxu0 0.0
        %801 = vmatpush1.msra.mxu0 0.0
        %802 = vmatprep.subr.mxu0 0.0
        %803 = vmatpush1.msra.mxu0 0.0
        %804 = vmatprep.subr.mxu0 0.0
        %805 = vmatpush1.msra.mxu0 0.0
        %806 = vmatprep.subr.mxu0 0.0
        %807 = vmatpush1.msra.mxu0 0.0
        %808 = vmatprep.subr.mxu0 0.0
        %809 = vmatpush1.msra.mxu0 0.0
        %810 = vmatprep.subr.mxu0 0.0
        %811 = vmatpush1.msra.mxu0 0.0
        %812 = vmatprep.subr.mxu0 0.0
        %813 = vmatpush1.msra.mxu0 0.0
        %814 = vmatprep.subr.mxu0 0.0
        %815 = vmatpush1.msra.mxu0 0.0
        %816 = vmatprep.subr.mxu0 0.0
        %817 = vmatpush1.msra.mxu0 0.0
        %818 = vmatprep.subr.mxu0 0.0
        %819 = vmatpush1.msra.mxu0 0.0
        %820 = vmatprep.subr.mxu0 0.0
        %821 = vmatpush1.msra.mxu0 0.0
        %822 = vmatprep.subr.mxu0 0.0
        %823 = vmatpush1.msra.mxu0 0.0
        %824 = vmatprep.subr.mxu0 0.0
        %825 = vmatpush1.msra.mxu0 0.0
        %826 = vmatprep.subr.mxu0 0.0
        %827 = vmatpush1.msra.mxu0 0.0
        %828 = vmatprep.subr.mxu0 0.0
        %829 = vmatpush1.msra.mxu0 0.0
        %830 = vmatprep.subr.mxu0 0.0
        %831 = vmatpush1.msra.mxu0 0.0
        %832 = vmatprep.subr.mxu0 0.0
        %833 = vmatpush1.msra.mxu0 0.0
        %834 = vmatprep.subr.mxu0 0.0
        %835 = vmatpush1.msra.mxu0 0.0
        %836 = vmatprep.mubr.f32.mxu0 0.0
        %837 = vmatmul.mubr.f32.gmra.mrb[0].mxu0 %v770
        %v838 = vpop.f32.mrb[0].mxu0
        %v839 = vadd.f32 %v768, %v838
        %v840 = vpop.f32.mrb[0].mxu0
        %841 = vdwg.mxu0
        %v842 = vadd.f32 %v839, %v342
        %v843 = vsel %vm385, %v842, 0.0
        %844 = vadd.xlane.f32.xlu0 %v843
        %v845 = vpop.xlane.xlu0 %844
        %v846 = vrcp.pop 32.0
        %v847 = vmul.f32 %v845, %v846
        %v848 = vmul.f32 %v842, %v842
        %v849 = vsel %vm385, %v848, 0.0
        %850 = vadd.xlane.f32.xlu0 %v849
        %v851 = vpop.xlane.xlu0 %850
        %v852 = vmul.f32 %v851, %v846
        %v853 = vmul.f32 %v847, %v847
        %v854 = vsub.f32 %v852, %v853
        %v855 = vsub.f32 %v842, %v847
        %v856 = vadd.f32 %v854, 1e-05
        %v857 = vrsqrt.pop %v856
        %v858 = vmul.f32 %v855, %v857
        %v859 = vlaneseq
        %v860 = vshrl.u32 %v859, 7
        %v861 = vsub.s32 2, %v860
        %v862 = vrot.slane %v380, %v861
        %v863 = vmul.f32 %v858, %v862
        %v864 = vlaneseq
        %v865 = vshrl.u32 %v864, 7
        %v866 = vsub.s32 3, %v865
        %v867 = vrot.slane %v380, %v866
        %v868 = vadd.f32 %v863, %v867
        %v869 = vlaneseq
        %v870 = vshrl.u32 %v869, 7
        %v871 = vsub.s32 4, %v870
        %v872 = vrot.slane %v380, %v871
        %v874 = vsel %vm385, %v868, 0
        %876 = vmatprep.subr.mxu0 0.0
        %877 = vmatpush1.msra.mxu0 %v360
        %878 = vmatprep.subr.mxu0 0.0
        %879 = vmatpush1.msra.mxu0 %v361
        %880 = vmatprep.subr.mxu0 0.0
        %881 = vmatpush1.msra.mxu0 %v362
        %882 = vmatprep.subr.mxu0 0.0
        %883 = vmatpush1.msra.mxu0 %v363
        %884 = vmatprep.subr.mxu0 0.0
        %885 = vmatpush1.msra.mxu0 0.0
        %886 = vmatprep.subr.mxu0 0.0
        %887 = vmatpush1.msra.mxu0 0.0
        %888 = vmatprep.subr.mxu0 0.0
        %889 = vmatpush1.msra.mxu0 0.0
        %890 = vmatprep.subr.mxu0 0.0
        %891 = vmatpush1.msra.mxu0 0.0
        %892 = vmatprep.subr.mxu0 0.0
        %893 = vmatpush1.msra.mxu0 0.0
        %894 = vmatprep.subr.mxu0 0.0
        %895 = vmatpush1.msra.mxu0 0.0
        %896 = vmatprep.subr.mxu0 0.0
        %897 = vmatpush1.msra.mxu0 0.0
        %898 = vmatprep.subr.mxu0 0.0
        %899 = vmatpush1.msra.mxu0 0.0
        %900 = vmatprep.subr.mxu0 0.0
        %901 = vmatpush1.msra.mxu0 0.0
        %902 = vmatprep.subr.mxu0 0.0
        %903 = vmatpush1.msra.mxu0 0.0
        %904 = vmatprep.subr.mxu0 0.0
        %905 = vmatpush1.msra.mxu0 0.0
        %906 = vmatprep.subr.mxu0 0.0
        %907 = vmatpush1.msra.mxu0 0.0
        %908 = vmatprep.subr.mxu0 0.0
        %909 = vmatpush1.msra.mxu0 0.0
        %910 = vmatprep.subr.mxu0 0.0
        %911 = vmatpush1.msra.mxu0 0.0
        %912 = vmatprep.subr.mxu0 0.0
        %913 = vmatpush1.msra.mxu0 0.0
        %914 = vmatprep.subr.mxu0 0.0
        %915 = vmatpush1.msra.mxu0 0.0
        %916 = vmatprep.subr.mxu0 0.0
        %917 = vmatpush1.msra.mxu0 0.0
        %918 = vmatprep.subr.mxu0 0.0
        %919 = vmatpush1.msra.mxu0 0.0
        %920 = vmatprep.subr.mxu0 0.0
        %921 = vmatpush1.msra.mxu0 0.0
        %922 = vmatprep.subr.mxu0 0.0
        %923 = vmatpush1.msra.mxu0 0.0
        %924 = vmatprep.subr.mxu0 0.0
        %925 = vmatpush1.msra.mxu0 0.0
        %926 = vmatprep.subr.mxu0 0.0
        %927 = vmatpush1.msra.mxu0 0.0
        %928 = vmatprep.subr.mxu0 0.0
        %929 = vmatpush1.msra.mxu0 0.0
        %930 = vmatprep.subr.mxu0 0.0
        %931 = vmatpush1.msra.mxu0 0.0
        %932 = vmatprep.subr.mxu0 0.0
        %933 = vmatpush1.msra.mxu0 0.0
        %934 = vmatprep.subr.mxu0 0.0
        %935 = vmatpush1.msra.mxu0 0.0
        %936 = vmatprep.subr.mxu0 0.0
        %937 = vmatpush1.msra.mxu0 0.0
        %938 = vmatprep.subr.mxu0 0.0
        %939 = vmatpush1.msra.mxu0 0.0
        %940 = vmatprep.mubr.f32.mxu0 0.0
        %941 = vmatmul.mubr.f32.gmra.mrb[0].mxu0 %v874
        %v942 = vpop.f32.mrb[0].mxu0
        %v943 = vadd.f32 %v872, %v942
        %v944 = vpop.f32.mrb[0].mxu0
        %945 = vdwg.mxu0
        %v946 = vmul.f32 %v943, 0.5
        %v947 = vmul.f32 %v943, 0.044715
        %v948 = vmul.f32 %v947, %v943
        %v949 = vmul.f32 %v948, %v943
        %v950 = vadd.f32 %v943, %v949
        %v951 = vmul.f32 %v950, 0.7978846
        %v952 = vtanh.pop %v951
        %v953 = vadd.f32 %v952, 1.0
        %v954 = vmul.f32 %v946, %v953
        %v955 = vlaneseq
        %v956 = vshrl.u32 %v955, 7
        %v957 = vsub.s32 5, %v956
        %v958 = vrot.slane %v380, %v957
        %959 = vmatprep.subr.mxu0 0.0
        %960 = vmatpush1.msra.mxu0 %v364
        %961 = vmatprep.subr.mxu0 0.0
        %962 = vmatpush1.msra.mxu0 %v365
        %963 = vmatprep.subr.mxu0 0.0
        %964 = vmatpush1.msra.mxu0 %v366
        %965 = vmatprep.subr.mxu0 0.0
        %966 = vmatpush1.msra.mxu0 %v367
        %967 = vmatprep.subr.mxu0 0.0
        %968 = vmatpush1.msra.mxu0 %v368
        %969 = vmatprep.subr.mxu0 0.0
        %970 = vmatpush1.msra.mxu0 %v369
        %971 = vmatprep.subr.mxu0 0.0
        %972 = vmatpush1.msra.mxu0 %v370
        %973 = vmatprep.subr.mxu0 0.0
        %974 = vmatpush1.msra.mxu0 %v371
        %975 = vmatprep.subr.mxu0 0.0
        %976 = vmatpush1.msra.mxu0 %v372
        %977 = vmatprep.subr.mxu0 0.0
        %978 = vmatpush1.msra.mxu0 %v373
        %979 = vmatprep.subr.mxu0 0.0
        %980 = vmatpush1.msra.mxu0 %v374
        %981 = vmatprep.subr.mxu0 0.0
        %982 = vmatpush1.msra.mxu0 %v375
        %983 = vmatprep.subr.mxu0 0.0
        %984 = vmatpush1.msra.mxu0 %v376
        %985 = vmatprep.subr.mxu0 0.0
        %986 = vmatpush1.msra.mxu0 %v377
        %987 = vmatprep.subr.mxu0 0.0
        %988 = vmatpush1.msra.mxu0 %v378
        %989 = vmatprep.subr.mxu0 0.0
        %990 = vmatpush1.msra.mxu0 %v379
        %991 = vmatprep.subr.mxu0 0.0
        %992 = vmatpush1.msra.mxu0 0.0
        %993 = vmatprep.subr.mxu0 0.0
        %994 = vmatpush1.msra.mxu0 0.0
        %995 = vmatprep.subr.mxu0 0.0
        %996 = vmatpush1.msra.mxu0 0.0
        %997 = vmatprep.subr.mxu0 0.0
        %998 = vmatpush1.msra.mxu0 0.0
        %999 = vmatprep.subr.mxu0 0.0
        %1000 = vmatpush1.msra.mxu0 0.0
        %1001 = vmatprep.subr.mxu0 0.0
        %1002 = vmatpush1.msra.mxu0 0.0
        %1003 = vmatprep.subr.mxu0 0.0
        %1004 = vmatpush1.msra.mxu0 0.0
        %1005 = vmatprep.subr.mxu0 0.0
        %1006 = vmatpush1.msra.mxu0 0.0
        %1007 = vmatprep.subr.mxu0 0.0
        %1008 = vmatpush1.msra.mxu0 0.0
        %1009 = vmatprep.subr.mxu0 0.0
        %1010 = vmatpush1.msra.mxu0 0.0
        %1011 = vmatprep.subr.mxu0 0.0
        %1012 = vmatpush1.msra.mxu0 0.0
        %1013 = vmatprep.subr.mxu0 0.0
        %1014 = vmatpush1.msra.mxu0 0.0
        %1015 = vmatprep.subr.mxu0 0.0
        %1016 = vmatpush1.msra.mxu0 0.0
        %1017 = vmatprep.subr.mxu0 0.0
        %1018 = vmatpush1.msra.mxu0 0.0
        %1019 = vmatprep.subr.mxu0 0.0
        %1020 = vmatpush1.msra.mxu0 0.0
        %1021 = vmatprep.subr.mxu0 0.0
        %1022 = vmatpush1.msra.mxu0 0.0
        %1023 = vmatprep.mubr.f32.mxu0 0.0
        %1024 = vmatmul.mubr.f32.gmra.mrb[0].mxu0 %v954
        %v1025 = vpop.f32.mrb[0].mxu0
        %v1026 = vadd.f32 %v958, %v1025
        %v1027 = vpop.f32.mrb[0].mxu0
        %1028 = vdwg.mxu0
        %v1029 = vadd.f32 %v1026, %v868
        %v1030 = vsel %vm385, %v1029, 0.0
        %1031 = vadd.xlane.f32.xlu0 %v1030
        %v1032 = vpop.xlane.xlu0 %1031
        %v1033 = vmul.f32 %v1032, %v846
        %v1034 = vmul.f32 %v1029, %v1029
        %v1035 = vsel %vm385, %v1034, 0.0
        %1036 = vadd.xlane.f32.xlu0 %v1035
        %v1037 = vpop.xlane.xlu0 %1036
        %v1038 = vmul.f32 %v1037, %v846
        %v1039 = vmul.f32 %v1033, %v1033
        %v1040 = vsub.f32 %v1038, %v1039
        %v1041 = vsub.f32 %v1029, %v1033
        %v1042 = vadd.f32 %v1040, 1e-05
        %v1043 = vrsqrt.pop %v1042
        %v1044 = vmul.f32 %v1041, %v1043
        %v1045 = vlaneseq
        %v1046 = vshrl.u32 %v1045, 7
        %v1047 = vsub.s32 6, %v1046
        %v1048 = vrot.slane %v380, %v1047
        %v1049 = vmul.f32 %v1044, %v1048
        %v1050 = vlaneseq
        %v1051 = vshrl.u32 %v1050, 7
        %v1052 = vsub.s32 7, %v1051
        %v1053 = vrot.slane %v380, %v1052
        %v1054 = vadd.f32 %v1049, %v1053
        %s1055 = scalar_lea.vmem %s4, 32
        %v1056 = vld [vmem:[%s1055] sm:$0xff]
        %v1057 = vld [vmem:[%s1055 + $0x8] sm:$0xff]
        %v1058 = vld [vmem:[%s1055 + $0x10] sm:$0xff]
        %v1059 = vld [vmem:[%s1055 + $0x18] sm:$0xff]
        %s1060 = scalar_lea.vmem %s5, 32
        %v1061 = vld [vmem:[%s1060] sm:$0xff]
        %v1062 = vld [vmem:[%s1060 + $0x8] sm:$0xff]
        %v1063 = vld [vmem:[%s1060 + $0x10] sm:$0xff]
        %v1064 = vld [vmem:[%s1060 + $0x18] sm:$0xff]
        %s1065 = scalar_lea.vmem %s6, 32
        %v1066 = vld [vmem:[%s1065] sm:$0xff]
        %v1067 = vld [vmem:[%s1065 + $0x8] sm:$0xff]
        %v1068 = vld [vmem:[%s1065 + $0x10] sm:$0xff]
        %v1069 = vld [vmem:[%s1065 + $0x18] sm:$0xff]
        %s1070 = scalar_lea.vmem %s7, 128
        %v1071 = vld [vmem:[%s1070] sm:$0xff]
        %v1072 = vld [vmem:[%s1070 + $0x8] sm:$0xff]
        %v1073 = vld [vmem:[%s1070 + $0x10] sm:$0xff]
        %v1074 = vld [vmem:[%s1070 + $0x18] sm:$0xff]
        %v1075 = vld [vmem:[%s1070 + $0x20] sm:$0xff]
        %v1076 = vld [vmem:[%s1070 + $0x28] sm:$0xff]
        %v1077 = vld [vmem:[%s1070 + $0x30] sm:$0xff]
        %v1078 = vld [vmem:[%s1070 + $0x38] sm:$0xff]
        %v1079 = vld [vmem:[%s1070 + $0x40] sm:$0xff]
        %v1080 = vld [vmem:[%s1070 + $0x48] sm:$0xff]
        %v1081 = vld [vmem:[%s1070 + $0x50] sm:$0xff]
        %v1082 = vld [vmem:[%s1070 + $0x58] sm:$0xff]
        %v1083 = vld [vmem:[%s1070 + $0x60] sm:$0xff]
        %v1084 = vld [vmem:[%s1070 + $0x68] sm:$0xff]
        %v1085 = vld [vmem:[%s1070 + $0x70] sm:$0xff]
        %v1086 = vld [vmem:[%s1070 + $0x78] sm:$0xff]
        %s1087 = scalar_lea.vmem %s8, 8
        %v1088 = vld [vmem:[%s1087] sm:$0xff]
        %v1089 = vlaneseq
        %v1090 = vshrl.u32 %v1089, 7
        %v1091 = vsub.s32 0, %v1090
        %v1092 = vrot.slane %v1088, %v1091
        %v1094 = vsel %vm385, %v1054, 0
        %1096 = vmatprep.subr.mxu0 0.0
        %1097 = vmatpush1.msra.mxu0 %v1056
        %1098 = vmatprep.subr.mxu0 0.0
        %1099 = vmatpush1.msra.mxu0 %v1057
        %1100 = vmatprep.subr.mxu0 0.0
        %1101 = vmatpush1.msra.mxu0 %v1058
        %1102 = vmatprep.subr.mxu0 0.0
        %1103 = vmatpush1.msra.mxu0 %v1059
        %1104 = vmatprep.subr.mxu0 0.0
        %1105 = vmatpush1.msra.mxu0 0.0
        %1106 = vmatprep.subr.mxu0 0.0
        %1107 = vmatpush1.msra.mxu0 0.0
        %1108 = vmatprep.subr.mxu0 0.0
        %1109 = vmatpush1.msra.mxu0 0.0
        %1110 = vmatprep.subr.mxu0 0.0
        %1111 = vmatpush1.msra.mxu0 0.0
        %1112 = vmatprep.subr.mxu0 0.0
        %1113 = vmatpush1.msra.mxu0 0.0
        %1114 = vmatprep.subr.mxu0 0.0
        %1115 = vmatpush1.msra.mxu0 0.0
        %1116 = vmatprep.subr.mxu0 0.0
        %1117 = vmatpush1.msra.mxu0 0.0
        %1118 = vmatprep.subr.mxu0 0.0
        %1119 = vmatpush1.msra.mxu0 0.0
        %1120 = vmatprep.subr.mxu0 0.0
        %1121 = vmatpush1.msra.mxu0 0.0
        %1122 = vmatprep.subr.mxu0 0.0
        %1123 = vmatpush1.msra.mxu0 0.0
        %1124 = vmatprep.subr.mxu0 0.0
        %1125 = vmatpush1.msra.mxu0 0.0
        %1126 = vmatprep.subr.mxu0 0.0
        %1127 = vmatpush1.msra.mxu0 0.0
        %1128 = vmatprep.subr.mxu0 0.0
        %1129 = vmatpush1.msra.mxu0 0.0
        %1130 = vmatprep.subr.mxu0 0.0
        %1131 = vmatpush1.msra.mxu0 0.0
        %1132 = vmatprep.subr.mxu0 0.0
        %1133 = vmatpush1.msra.mxu0 0.0
        %1134 = vmatprep.subr.mxu0 0.0
        %1135 = vmatpush1.msra.mxu0 0.0
        %1136 = vmatprep.subr.mxu0 0.0
        %1137 = vmatpush1.msra.mxu0 0.0
        %1138 = vmatprep.subr.mxu0 0.0
        %1139 = vmatpush1.msra.mxu0 0.0
        %1140 = vmatprep.subr.mxu0 0.0
        %1141 = vmatpush1.msra.mxu0 0.0
        %1142 = vmatprep.subr.mxu0 0.0
        %1143 = vmatpush1.msra.mxu0 0.0
        %1144 = vmatprep.subr.mxu0 0.0
        %1145 = vmatpush1.msra.mxu0 0.0
        %1146 = vmatprep.subr.mxu0 0.0
        %1147 = vmatpush1.msra.mxu0 0.0
        %1148 = vmatprep.subr.mxu0 0.0
        %1149 = vmatpush1.msra.mxu0 0.0
        %1150 = vmatprep.subr.mxu0 0.0
        %1151 = vmatpush1.msra.mxu0 0.0
        %1152 = vmatprep.subr.mxu0 0.0
        %1153 = vmatpush1.msra.mxu0 0.0
        %1154 = vmatprep.subr.mxu0 0.0
        %1155 = vmatpush1.msra.mxu0 0.0
        %1156 = vmatprep.subr.mxu0 0.0
        %1157 = vmatpush1.msra.mxu0 0.0
        %1158 = vmatprep.subr.mxu0 0.0
        %1159 = vmatpush1.msra.mxu0 0.0
        %1160 = vmatprep.mubr.f32.mxu0 0.0
        %1161 = vmatmul.mubr.f32.gmra.mrb[0].mxu0 %v1094
        %v1162 = vpop.f32.mrb[0].mxu0
        %v1163 = vadd.f32 %v1092, %v1162
        %v1164 = vpop.f32.mrb[0].mxu0
        %1165 = vdwg.mxu0
        %v1166 = vmul.f32 %v1163, 0.35355338
        %v1167 = vmul.f32 %v1163, %v465
        %v1168 = vmul.f32 %v1163, %v467
        %v1169 = vmul.f32 %v1163, %v469
        %v1170 = vmul.f32 %v1163, %v471
        %v1171 = vmul.f32 %v1163, %v481
        %v1172 = vmul.f32 %v1163, %v483
        %v1173 = vmul.f32 %v1163, %v485
        %v1174 = vmul.f32 %v1163, %v487
        %1179 = vrot.lane.b32.xlu0 %v1167, 96
        %v1180 = vpop.permute.xlu0 %1179
        %1181 = vrot.lane.b32.xlu0 %v1168, 96
        %v1182 = vpop.permute.xlu0 %1181
        %1183 = vrot.lane.b32.xlu0 %v1169, 96
        %v1184 = vpop.permute.xlu0 %1183
        %1185 = vrot.lane.b32.xlu0 %v1170, 96
        %v1186 = vpop.permute.xlu0 %1185
        %v1188 = vsel %vm385, %v1166, 0
        %v1190 = vsel %vm385, %v1180, 0
        %v1192 = vsel %vm385, %v1182, 0
        %v1194 = vsel %vm385, %v1184, 0
        %v1196 = vsel %vm385, %v1186, 0
        %1198 = vmatprep.subr.mxu0 0.0
        %1199 = vmatpush1.xpose.msra.mxu0 %v1190
        %1200 = vmatprep.subr.mxu0 0.0
        %1201 = vmatpush1.xpose.msra.mxu0 %v1192
        %1202 = vmatprep.subr.mxu0 0.0
        %1203 = vmatpush1.xpose.msra.mxu0 %v1194
        %1204 = vmatprep.subr.mxu0 0.0
        %1205 = vmatpush1.xpose.msra.mxu0 %v1196
        %1206 = vmatprep.subr.mxu0 0.0
        %1207 = vmatpush1.xpose.msra.mxu0 0.0
        %1208 = vmatprep.subr.mxu0 0.0
        %1209 = vmatpush1.xpose.msra.mxu0 0.0
        %1210 = vmatprep.subr.mxu0 0.0
        %1211 = vmatpush1.xpose.msra.mxu0 0.0
        %1212 = vmatprep.subr.mxu0 0.0
        %1213 = vmatpush1.xpose.msra.mxu0 0.0
        %1214 = vmatprep.subr.mxu0 0.0
        %1215 = vmatpush1.xpose.msra.mxu0 0.0
        %1216 = vmatprep.subr.mxu0 0.0
        %1217 = vmatpush1.xpose.msra.mxu0 0.0
        %1218 = vmatprep.subr.mxu0 0.0
        %1219 = vmatpush1.xpose.msra.mxu0 0.0
        %1220 = vmatprep.subr.mxu0 0.0
        %1221 = vmatpush1.xpose.msra.mxu0 0.0
        %1222 = vmatprep.subr.mxu0 0.0
        %1223 = vmatpush1.xpose.msra.mxu0 0.0
        %1224 = vmatprep.subr.mxu0 0.0
        %1225 = vmatpush1.xpose.msra.mxu0 0.0
        %1226 = vmatprep.subr.mxu0 0.0
        %1227 = vmatpush1.xpose.msra.mxu0 0.0
        %1228 = vmatprep.subr.mxu0 0.0
        %1229 = vmatpush1.xpose.msra.mxu0 0.0
        %1230 = vmatprep.subr.mxu0 0.0
        %1231 = vmatpush1.xpose.msra.mxu0 0.0
        %1232 = vmatprep.subr.mxu0 0.0
        %1233 = vmatpush1.xpose.msra.mxu0 0.0
        %1234 = vmatprep.subr.mxu0 0.0
        %1235 = vmatpush1.xpose.msra.mxu0 0.0
        %1236 = vmatprep.subr.mxu0 0.0
        %1237 = vmatpush1.xpose.msra.mxu0 0.0
        %1238 = vmatprep.subr.mxu0 0.0
        %1239 = vmatpush1.xpose.msra.mxu0 0.0
        %1240 = vmatprep.subr.mxu0 0.0
        %1241 = vmatpush1.xpose.msra.mxu0 0.0
        %1242 = vmatprep.subr.mxu0 0.0
        %1243 = vmatpush1.xpose.msra.mxu0 0.0
        %1244 = vmatprep.subr.mxu0 0.0
        %1245 = vmatpush1.xpose.msra.mxu0 0.0
        %1246 = vmatprep.subr.mxu0 0.0
        %1247 = vmatpush1.xpose.msra.mxu0 0.0
        %1248 = vmatprep.subr.mxu0 0.0
        %1249 = vmatpush1.xpose.msra.mxu0 0.0
        %1250 = vmatprep.subr.mxu0 0.0
        %1251 = vmatpush1.xpose.msra.mxu0 0.0
        %1252 = vmatprep.subr.mxu0 0.0
        %1253 = vmatpush1.xpose.msra.mxu0 0.0
        %1254 = vmatprep.subr.mxu0 0.0
        %1255 = vmatpush1.xpose.msra.mxu0 0.0
        %1256 = vmatprep.subr.mxu0 0.0
        %1257 = vmatpush1.xpose.msra.mxu0 0.0
        %1258 = vmatprep.subr.mxu0 0.0
        %1259 = vmatpush1.xpose.msra.mxu0 0.0
        %1260 = vmatprep.subr.mxu0 0.0
        %1261 = vmatpush1.xpose.msra.mxu0 0.0
        %1262 = vmatprep.mubr.f32.mxu0 0.0
        %1263 = vmatmul.mubr.f32.gmra.mrb[0].mxu0 %v1188
        %v1264 = vpop.f32.mrb[0].mxu0
        %v1265 = vadd.f32 %v500, %v1264
        %v1266 = vpop.f32.mrb[0].mxu0
        %1267 = vdwg.mxu0
        %v1268 = vsel %vm385, %v1265, -inf
        %1269 = vmax.xlane.f32.xlu0 %v1268
        %v1270 = vpop.xlane.xlu0 %1269
        %v1271 = vsub.f32 %v1265, %v1270
        %v1272 = vmul.f32 %v1271, 1.442695
        %v1273 = vpow.pop %v1272
        %v1275 = vsel %vm385, %v1273, 0
        %1277 = vmatprep.subr.mxu0 0.0
        %1278 = vmatpush1.msra.mxu0 %v348
        %1279 = vmatprep.subr.mxu0 0.0
        %1280 = vmatpush1.msra.mxu0 %v349
        %1281 = vmatprep.subr.mxu0 0.0
        %1282 = vmatpush1.msra.mxu0 %v350
        %1283 = vmatprep.subr.mxu0 0.0
        %1284 = vmatpush1.msra.mxu0 %v351
        %1285 = vmatprep.subr.mxu0 0.0
        %1286 = vmatpush1.msra.mxu0 0.0
        %1287 = vmatprep.subr.mxu0 0.0
        %1288 = vmatpush1.msra.mxu0 0.0
        %1289 = vmatprep.subr.mxu0 0.0
        %1290 = vmatpush1.msra.mxu0 0.0
        %1291 = vmatprep.subr.mxu0 0.0
        %1292 = vmatpush1.msra.mxu0 0.0
        %1293 = vmatprep.subr.mxu0 0.0
        %1294 = vmatpush1.msra.mxu0 0.0
        %1295 = vmatprep.subr.mxu0 0.0
        %1296 = vmatpush1.msra.mxu0 0.0
        %1297 = vmatprep.subr.mxu0 0.0
        %1298 = vmatpush1.msra.mxu0 0.0
        %1299 = vmatprep.subr.mxu0 0.0
        %1300 = vmatpush1.msra.mxu0 0.0
        %1301 = vmatprep.subr.mxu0 0.0
        %1302 = vmatpush1.msra.mxu0 0.0
        %1303 = vmatprep.subr.mxu0 0.0
        %1304 = vmatpush1.msra.mxu0 0.0
        %1305 = vmatprep.subr.mxu0 0.0
        %1306 = vmatpush1.msra.mxu0 0.0
        %1307 = vmatprep.subr.mxu0 0.0
        %1308 = vmatpush1.msra.mxu0 0.0
        %1309 = vmatprep.subr.mxu0 0.0
        %1310 = vmatpush1.msra.mxu0 0.0
        %1311 = vmatprep.subr.mxu0 0.0
        %1312 = vmatpush1.msra.mxu0 0.0
        %1313 = vmatprep.subr.mxu0 0.0
        %1314 = vmatpush1.msra.mxu0 0.0
        %1315 = vmatprep.subr.mxu0 0.0
        %1316 = vmatpush1.msra.mxu0 0.0
        %1317 = vmatprep.subr.mxu0 0.0
        %1318 = vmatpush1.msra.mxu0 0.0
        %1319 = vmatprep.subr.mxu0 0.0
        %1320 = vmatpush1.msra.mxu0 0.0
        %1321 = vmatprep.subr.mxu0 0.0
        %1322 = vmatpush1.msra.mxu0 0.0
        %1323 = vmatprep.subr.mxu0 0.0
        %1324 = vmatpush1.msra.mxu0 0.0
        %1325 = vmatprep.subr.mxu0 0.0
        %1326 = vmatpush1.msra.mxu0 0.0
        %1327 = vmatprep.subr.mxu0 0.0
        %1328 = vmatpush1.msra.mxu0 0.0
        %1329 = vmatprep.subr.mxu0 0.0
        %1330 = vmatpush1.msra.mxu0 0.0
        %1331 = vmatprep.subr.mxu0 0.0
        %1332 = vmatpush1.msra.mxu0 0.0
        %1333 = vmatprep.subr.mxu0 0.0
        %1334 = vmatpush1.msra.mxu0 0.0
        %1335 = vmatprep.subr.mxu0 0.0
        %1336 = vmatpush1.msra.mxu0 0.0
        %1337 = vmatprep.subr.mxu0 0.0
        %1338 = vmatpush1.msra.mxu0 0.0
        %1339 = vmatprep.subr.mxu0 0.0
        %1340 = vmatpush1.msra.mxu0 0.0
        %1341 = vmatprep.mubr.f32.mxu0 0.0
        %1342 = vmatmul.mubr.f32.gmra.mrb[0].mxu0 %v1275
        %v1343 = vpop.f32.mrb[0].mxu0
        %v1344 = vadd.f32 0.0, %v1343
        %v1345 = vpop.f32.mrb[0].mxu0
        %1346 = vdwg.mxu0
        %v1347 = vrcp.pop %v1344
        %v1348 = vmul.f32 %v1273, %v1347
        %1353 = vrot.lane.b32.xlu0 %v1171, 64
        %v1354 = vpop.permute.xlu0 %1353
        %1355 = vrot.lane.b32.xlu0 %v1172, 64
        %v1356 = vpop.permute.xlu0 %1355
        %1357 = vrot.lane.b32.xlu0 %v1173, 64
        %v1358 = vpop.permute.xlu0 %1357
        %1359 = vrot.lane.b32.xlu0 %v1174, 64
        %v1360 = vpop.permute.xlu0 %1359
        %v1366 = vsel %vm385, %v1348, 0
        %1368 = vmatprep.subr.mxu0 0.0
        %1369 = vmatpush1.msra.mxu0 %v1354
        %1370 = vmatprep.subr.mxu0 0.0
        %1371 = vmatpush1.msra.mxu0 %v1356
        %1372 = vmatprep.subr.mxu0 0.0
        %1373 = vmatpush1.msra.mxu0 %v1358
        %1374 = vmatprep.subr.mxu0 0.0
        %1375 = vmatpush1.msra.mxu0 %v1360
        %1376 = vmatprep.subr.mxu0 0.0
        %1377 = vmatpush1.msra.mxu0 0.0
        %1378 = vmatprep.subr.mxu0 0.0
        %1379 = vmatpush1.msra.mxu0 0.0
        %1380 = vmatprep.subr.mxu0 0.0
        %1381 = vmatpush1.msra.mxu0 0.0
        %1382 = vmatprep.subr.mxu0 0.0
        %1383 = vmatpush1.msra.mxu0 0.0
        %1384 = vmatprep.subr.mxu0 0.0
        %1385 = vmatpush1.msra.mxu0 0.0
        %1386 = vmatprep.subr.mxu0 0.0
        %1387 = vmatpush1.msra.mxu0 0.0
        %1388 = vmatprep.subr.mxu0 0.0
        %1389 = vmatpush1.msra.mxu0 0.0
        %1390 = vmatprep.subr.mxu0 0.0
        %1391 = vmatpush1.msra.mxu0 0.0
        %1392 = vmatprep.subr.mxu0 0.0
        %1393 = vmatpush1.msra.mxu0 0.0
        %1394 = vmatprep.subr.mxu0 0.0
        %1395 = vmatpush1.msra.mxu0 0.0
        %1396 = vmatprep.subr.mxu0 0.0
        %1397 = vmatpush1.msra.mxu0 0.0
        %1398 = vmatprep.subr.mxu0 0.0
        %1399 = vmatpush1.msra.mxu0 0.0
        %1400 = vmatprep.subr.mxu0 0.0
        %1401 = vmatpush1.msra.mxu0 0.0
        %1402 = vmatprep.subr.mxu0 0.0
        %1403 = vmatpush1.msra.mxu0 0.0
        %1404 = vmatprep.subr.mxu0 0.0
        %1405 = vmatpush1.msra.mxu0 0.0
        %1406 = vmatprep.subr.mxu0 0.0
        %1407 = vmatpush1.msra.mxu0 0.0
        %1408 = vmatprep.subr.mxu0 0.0
        %1409 = vmatpush1.msra.mxu0 0.0
        %1410 = vmatprep.subr.mxu0 0.0
        %1411 = vmatpush1.msra.mxu0 0.0
        %1412 = vmatprep.subr.mxu0 0.0
        %1413 = vmatpush1.msra.mxu0 0.0
        %1414 = vmatprep.subr.mxu0 0.0
        %1415 = vmatpush1.msra.mxu0 0.0
        %1416 = vmatprep.subr.mxu0 0.0
        %1417 = vmatpush1.msra.mxu0 0.0
        %1418 = vmatprep.subr.mxu0 0.0
        %1419 = vmatpush1.msra.mxu0 0.0
        %1420 = vmatprep.subr.mxu0 0.0
        %1421 = vmatpush1.msra.mxu0 0.0
        %1422 = vmatprep.subr.mxu0 0.0
        %1423 = vmatpush1.msra.mxu0 0.0
        %1424 = vmatprep.subr.mxu0 0.0
        %1425 = vmatpush1.msra.mxu0 0.0
        %1426 = vmatprep.subr.mxu0 0.0
        %1427 = vmatpush1.msra.mxu0 0.0
        %1428 = vmatprep.subr.mxu0 0.0
        %1429 = vmatpush1.msra.mxu0 0.0
        %1430 = vmatprep.subr.mxu0 0.0
        %1431 = vmatpush1.msra.mxu0 0.0
        %1432 = vmatprep.mubr.f32.mxu0 0.0
        %1433 = vmatmul.mubr.f32.gmra.mrb[0].mxu0 %v1366
        %v1434 = vpop.f32.mrb[0].mxu0
        %v1435 = vadd.f32 0.0, %v1434
        %v1436 = vpop.f32.mrb[0].mxu0
        %1437 = vdwg.mxu0
        %v1438 = vlaneseq
        %v1439 = vshrl.u32 %v1438, 7
        %v1440 = vsub.s32 1, %v1439
        %v1441 = vrot.slane %v1088, %v1440
        %v1443 = vsel %vm385, %v1435, 0
        %1445 = vmatprep.subr.mxu0 0.0
        %1446 = vmatpush1.msra.mxu0 %v1061
        %1447 = vmatprep.subr.mxu0 0.0
        %1448 = vmatpush1.msra.mxu0 %v1062
        %1449 = vmatprep.subr.mxu0 0.0
        %1450 = vmatpush1.msra.mxu0 %v1063
        %1451 = vmatprep.subr.mxu0 0.0
        %1452 = vmatpush1.msra.mxu0 %v1064
        %1453 = vmatprep.subr.mxu0 0.0
        %1454 = vmatpush1.msra.mxu0 0.0
        %1455 = vmatprep.subr.mxu0 0.0
        %1456 = vmatpush1.msra.mxu0 0.0
        %1457 = vmatprep.subr.mxu0 0.0
        %1458 = vmatpush1.msra.mxu0 0.0
        %1459 = vmatprep.subr.mxu0 0.0
        %1460 = vmatpush1.msra.mxu0 0.0
        %1461 = vmatprep.subr.mxu0 0.0
        %1462 = vmatpush1.msra.mxu0 0.0
        %1463 = vmatprep.subr.mxu0 0.0
        %1464 = vmatpush1.msra.mxu0 0.0
        %1465 = vmatprep.subr.mxu0 0.0
        %1466 = vmatpush1.msra.mxu0 0.0
        %1467 = vmatprep.subr.mxu0 0.0
        %1468 = vmatpush1.msra.mxu0 0.0
        %1469 = vmatprep.subr.mxu0 0.0
        %1470 = vmatpush1.msra.mxu0 0.0
        %1471 = vmatprep.subr.mxu0 0.0
        %1472 = vmatpush1.msra.mxu0 0.0
        %1473 = vmatprep.subr.mxu0 0.0
        %1474 = vmatpush1.msra.mxu0 0.0
        %1475 = vmatprep.subr.mxu0 0.0
        %1476 = vmatpush1.msra.mxu0 0.0
        %1477 = vmatprep.subr.mxu0 0.0
        %1478 = vmatpush1.msra.mxu0 0.0
        %1479 = vmatprep.subr.mxu0 0.0
        %1480 = vmatpush1.msra.mxu0 0.0
        %1481 = vmatprep.subr.mxu0 0.0
        %1482 = vmatpush1.msra.mxu0 0.0
        %1483 = vmatprep.subr.mxu0 0.0
        %1484 = vmatpush1.msra.mxu0 0.0
        %1485 = vmatprep.subr.mxu0 0.0
        %1486 = vmatpush1.msra.mxu0 0.0
        %1487 = vmatprep.subr.mxu0 0.0
        %1488 = vmatpush1.msra.mxu0 0.0
        %1489 = vmatprep.subr.mxu0 0.0
        %1490 = vmatpush1.msra.mxu0 0.0
        %1491 = vmatprep.subr.mxu0 0.0
        %1492 = vmatpush1.msra.mxu0 0.0
        %1493 = vmatprep.subr.mxu0 0.0
        %1494 = vmatpush1.msra.mxu0 0.0
        %1495 = vmatprep.subr.mxu0 0.0
        %1496 = vmatpush1.msra.mxu0 0.0
        %1497 = vmatprep.subr.mxu0 0.0
        %1498 = vmatpush1.msra.mxu0 0.0
        %1499 = vmatprep.subr.mxu0 0.0
        %1500 = vmatpush1.msra.mxu0 0.0
        %1501 = vmatprep.subr.mxu0 0.0
        %1502 = vmatpush1.msra.mxu0 0.0
        %1503 = vmatprep.subr.mxu0 0.0
        %1504 = vmatpush1.msra.mxu0 0.0
        %1505 = vmatprep.subr.mxu0 0.0
        %1506 = vmatpush1.msra.mxu0 0.0
        %1507 = vmatprep.subr.mxu0 0.0
        %1508 = vmatpush1.msra.mxu0 0.0
        %1509 = vmatprep.mubr.f32.mxu0 0.0
        %1510 = vmatmul.mubr.f32.gmra.mrb[0].mxu0 %v1443
        %v1511 = vpop.f32.mrb[0].mxu0
        %v1512 = vadd.f32 %v1441, %v1511
        %v1513 = vpop.f32.mrb[0].mxu0
        %1514 = vdwg.mxu0
        %v1515 = vadd.f32 %v1512, %v1054
        %v1516 = vsel %vm385, %v1515, 0.0
        %1517 = vadd.xlane.f32.xlu0 %v1516
        %v1518 = vpop.xlane.xlu0 %1517
        %v1519 = vmul.f32 %v1518, %v846
        %v1520 = vmul.f32 %v1515, %v1515
        %v1521 = vsel %vm385, %v1520, 0.0
        %1522 = vadd.xlane.f32.xlu0 %v1521
        %v1523 = vpop.xlane.xlu0 %1522
        %v1524 = vmul.f32 %v1523, %v846
        %v1525 = vmul.f32 %v1519, %v1519
        %v1526 = vsub.f32 %v1524, %v1525
        %v1527 = vsub.f32 %v1515, %v1519
        %v1528 = vadd.f32 %v1526, 1e-05
        %v1529 = vrsqrt.pop %v1528
        %v1530 = vmul.f32 %v1527, %v1529
        %v1531 = vlaneseq
        %v1532 = vshrl.u32 %v1531, 7
        %v1533 = vsub.s32 2, %v1532
        %v1534 = vrot.slane %v1088, %v1533
        %v1535 = vmul.f32 %v1530, %v1534
        %v1536 = vlaneseq
        %v1537 = vshrl.u32 %v1536, 7
        %v1538 = vsub.s32 3, %v1537
        %v1539 = vrot.slane %v1088, %v1538
        %v1540 = vadd.f32 %v1535, %v1539
        %v1541 = vlaneseq
        %v1542 = vshrl.u32 %v1541, 7
        %v1543 = vsub.s32 4, %v1542
        %v1544 = vrot.slane %v1088, %v1543
        %v1546 = vsel %vm385, %v1540, 0
        %1548 = vmatprep.subr.mxu0 0.0
        %1549 = vmatpush1.msra.mxu0 %v1066
        %1550 = vmatprep.subr.mxu0 0.0
        %1551 = vmatpush1.msra.mxu0 %v1067
        %1552 = vmatprep.subr.mxu0 0.0
        %1553 = vmatpush1.msra.mxu0 %v1068
        %1554 = vmatprep.subr.mxu0 0.0
        %1555 = vmatpush1.msra.mxu0 %v1069
        %1556 = vmatprep.subr.mxu0 0.0
        %1557 = vmatpush1.msra.mxu0 0.0
        %1558 = vmatprep.subr.mxu0 0.0
        %1559 = vmatpush1.msra.mxu0 0.0
        %1560 = vmatprep.subr.mxu0 0.0
        %1561 = vmatpush1.msra.mxu0 0.0
        %1562 = vmatprep.subr.mxu0 0.0
        %1563 = vmatpush1.msra.mxu0 0.0
        %1564 = vmatprep.subr.mxu0 0.0
        %1565 = vmatpush1.msra.mxu0 0.0
        %1566 = vmatprep.subr.mxu0 0.0
        %1567 = vmatpush1.msra.mxu0 0.0
        %1568 = vmatprep.subr.mxu0 0.0
        %1569 = vmatpush1.msra.mxu0 0.0
        %1570 = vmatprep.subr.mxu0 0.0
        %1571 = vmatpush1.msra.mxu0 0.0
        %1572 = vmatprep.subr.mxu0 0.0
        %1573 = vmatpush1.msra.mxu0 0.0
        %1574 = vmatprep.subr.mxu0 0.0
        %1575 = vmatpush1.msra.mxu0 0.0
        %1576 = vmatprep.subr.mxu0 0.0
        %1577 = vmatpush1.msra.mxu0 0.0
        %1578 = vmatprep.subr.mxu0 0.0
        %1579 = vmatpush1.msra.mxu0 0.0
        %1580 = vmatprep.subr.mxu0 0.0
        %1581 = vmatpush1.msra.mxu0 0.0
        %1582 = vmatprep.subr.mxu0 0.0
        %1583 = vmatpush1.msra.mxu0 0.0
        %1584 = vmatprep.subr.mxu0 0.0
        %1585 = vmatpush1.msra.mxu0 0.0
        %1586 = vmatprep.subr.mxu0 0.0
        %1587 = vmatpush1.msra.mxu0 0.0
        %1588 = vmatprep.subr.mxu0 0.0
        %1589 = vmatpush1.msra.mxu0 0.0
        %1590 = vmatprep.subr.mxu0 0.0
        %1591 = vmatpush1.msra.mxu0 0.0
        %1592 = vmatprep.subr.mxu0 0.0
        %1593 = vmatpush1.msra.mxu0 0.0
        %1594 = vmatprep.subr.mxu0 0.0
        %1595 = vmatpush1.msra.mxu0 0.0
        %1596 = vmatprep.subr.mxu0 0.0
        %1597 = vmatpush1.msra.mxu0 0.0
        %1598 = vmatprep.subr.mxu0 0.0
        %1599 = vmatpush1.msra.mxu0 0.0
        %1600 = vmatprep.subr.mxu0 0.0
        %1601 = vmatpush1.msra.mxu0 0.0
        %1602 = vmatprep.subr.mxu0 0.0
        %1603 = vmatpush1.msra.mxu0 0.0
        %1604 = vmatprep.subr.mxu0 0.0
        %1605 = vmatpush1.msra.mxu0 0.0
        %1606 = vmatprep.subr.mxu0 0.0
        %1607 = vmatpush1.msra.mxu0 0.0
        %1608 = vmatprep.subr.mxu0 0.0
        %1609 = vmatpush1.msra.mxu0 0.0
        %1610 = vmatprep.subr.mxu0 0.0
        %1611 = vmatpush1.msra.mxu0 0.0
        %1612 = vmatprep.mubr.f32.mxu0 0.0
        %1613 = vmatmul.mubr.f32.gmra.mrb[0].mxu0 %v1546
        %v1614 = vpop.f32.mrb[0].mxu0
        %v1615 = vadd.f32 %v1544, %v1614
        %v1616 = vpop.f32.mrb[0].mxu0
        %1617 = vdwg.mxu0
        %v1618 = vmul.f32 %v1615, 0.5
        %v1619 = vmul.f32 %v1615, 0.044715
        %v1620 = vmul.f32 %v1619, %v1615
        %v1621 = vmul.f32 %v1620, %v1615
        %v1622 = vadd.f32 %v1615, %v1621
        %v1623 = vmul.f32 %v1622, 0.7978846
        %v1624 = vtanh.pop %v1623
        %v1625 = vadd.f32 %v1624, 1.0
        %v1626 = vmul.f32 %v1618, %v1625
        %v1627 = vlaneseq
        %v1628 = vshrl.u32 %v1627, 7
        %v1629 = vsub.s32 5, %v1628
        %v1630 = vrot.slane %v1088, %v1629
        %1631 = vmatprep.subr.mxu0 0.0
        %1632 = vmatpush1.msra.mxu0 %v1071
        %1633 = vmatprep.subr.mxu0 0.0
        %1634 = vmatpush1.msra.mxu0 %v1072
        %1635 = vmatprep.subr.mxu0 0.0
        %1636 = vmatpush1.msra.mxu0 %v1073
        %1637 = vmatprep.subr.mxu0 0.0
        %1638 = vmatpush1.msra.mxu0 %v1074
        %1639 = vmatprep.subr.mxu0 0.0
        %1640 = vmatpush1.msra.mxu0 %v1075
        %1641 = vmatprep.subr.mxu0 0.0
        %1642 = vmatpush1.msra.mxu0 %v1076
        %1643 = vmatprep.subr.mxu0 0.0
        %1644 = vmatpush1.msra.mxu0 %v1077
        %1645 = vmatprep.subr.mxu0 0.0
        %1646 = vmatpush1.msra.mxu0 %v1078
        %1647 = vmatprep.subr.mxu0 0.0
        %1648 = vmatpush1.msra.mxu0 %v1079
        %1649 = vmatprep.subr.mxu0 0.0
        %1650 = vmatpush1.msra.mxu0 %v1080
        %1651 = vmatprep.subr.mxu0 0.0
        %1652 = vmatpush1.msra.mxu0 %v1081
        %1653 = vmatprep.subr.mxu0 0.0
        %1654 = vmatpush1.msra.mxu0 %v1082
        %1655 = vmatprep.subr.mxu0 0.0
        %1656 = vmatpush1.msra.mxu0 %v1083
        %1657 = vmatprep.subr.mxu0 0.0
        %1658 = vmatpush1.msra.mxu0 %v1084
        %1659 = vmatprep.subr.mxu0 0.0
        %1660 = vmatpush1.msra.mxu0 %v1085
        %1661 = vmatprep.subr.mxu0 0.0
        %1662 = vmatpush1.msra.mxu0 %v1086
        %1663 = vmatprep.subr.mxu0 0.0
        %1664 = vmatpush1.msra.mxu0 0.0
        %1665 = vmatprep.subr.mxu0 0.0
        %1666 = vmatpush1.msra.mxu0 0.0
        %1667 = vmatprep.subr.mxu0 0.0
        %1668 = vmatpush1.msra.mxu0 0.0
        %1669 = vmatprep.subr.mxu0 0.0
        %1670 = vmatpush1.msra.mxu0 0.0
        %1671 = vmatprep.subr.mxu0 0.0
        %1672 = vmatpush1.msra.mxu0 0.0
        %1673 = vmatprep.subr.mxu0 0.0
        %1674 = vmatpush1.msra.mxu0 0.0
        %1675 = vmatprep.subr.mxu0 0.0
        %1676 = vmatpush1.msra.mxu0 0.0
        %1677 = vmatprep.subr.mxu0 0.0
        %1678 = vmatpush1.msra.mxu0 0.0
        %1679 = vmatprep.subr.mxu0 0.0
        %1680 = vmatpush1.msra.mxu0 0.0
        %1681 = vmatprep.subr.mxu0 0.0
        %1682 = vmatpush1.msra.mxu0 0.0
        %1683 = vmatprep.subr.mxu0 0.0
        %1684 = vmatpush1.msra.mxu0 0.0
        %1685 = vmatprep.subr.mxu0 0.0
        %1686 = vmatpush1.msra.mxu0 0.0
        %1687 = vmatprep.subr.mxu0 0.0
        %1688 = vmatpush1.msra.mxu0 0.0
        %1689 = vmatprep.subr.mxu0 0.0
        %1690 = vmatpush1.msra.mxu0 0.0
        %1691 = vmatprep.subr.mxu0 0.0
        %1692 = vmatpush1.msra.mxu0 0.0
        %1693 = vmatprep.subr.mxu0 0.0
        %1694 = vmatpush1.msra.mxu0 0.0
        %1695 = vmatprep.mubr.f32.mxu0 0.0
        %1696 = vmatmul.mubr.f32.gmra.mrb[0].mxu0 %v1626
        %v1697 = vpop.f32.mrb[0].mxu0
        %v1698 = vadd.f32 %v1630, %v1697
        %v1699 = vpop.f32.mrb[0].mxu0
        %1700 = vdwg.mxu0
        %v1701 = vadd.f32 %v1698, %v1540
        %v1702 = vsel %vm385, %v1701, 0.0
        %1703 = vadd.xlane.f32.xlu0 %v1702
        %v1704 = vpop.xlane.xlu0 %1703
        %v1705 = vmul.f32 %v1704, %v846
        %v1706 = vmul.f32 %v1701, %v1701
        %v1707 = vsel %vm385, %v1706, 0.0
        %1708 = vadd.xlane.f32.xlu0 %v1707
        %v1709 = vpop.xlane.xlu0 %1708
        %v1710 = vmul.f32 %v1709, %v846
        %v1711 = vmul.f32 %v1705, %v1705
        %v1712 = vsub.f32 %v1710, %v1711
        %v1713 = vsub.f32 %v1701, %v1705
        %v1714 = vadd.f32 %v1712, 1e-05
        %v1715 = vrsqrt.pop %v1714
        %v1716 = vmul.f32 %v1713, %v1715
        %v1717 = vlaneseq
        %v1718 = vshrl.u32 %v1717, 7
        %v1719 = vsub.s32 6, %v1718
        %v1720 = vrot.slane %v1088, %v1719
        %v1721 = vmul.f32 %v1716, %v1720
        %v1722 = vlaneseq
        %v1723 = vshrl.u32 %v1722, 7
        %v1724 = vsub.s32 7, %v1723
        %v1725 = vrot.slane %v1088, %v1724
        %v1726 = vadd.f32 %v1721, %v1725
        %1727 = vst.msk [vmem:[%s334] sm:$0xff] %vm385, %v1726
        %s1728 = sand.u32 %s230, 1
        %s1729 = scalar_lea.sflag [#allocation3], %s1728
        %s1730 = sand.u32 %s230, 1
        %s1731 = smul.addr %s1730, 8
        %s1732 = scalar_lea.vmem [#allocation2], %s1731
        // Predicated region
        $region57: #{roberta_partial_encoder.1} parent=55 // pred_check
          %p1733 = pneg %p240
        $region58: #{roberta_partial_encoder.1} parent=55 // pred_check_branch
          %1735 = sbr.rel (%p1733) target = $region60
        $region59: #{roberta_partial_encoder.1} parent=55 // pred_region
          %s1737 = ssub.s32 128, 128
          %1738 = vsyncadd %s1729, %s1737
          %s1739 = smul.addr %s23, 128
          %s1740 = scalar_lea.hbm %s9, %s1739
          %s1742 = sshll.u32 %s1732, 4
          %s1743 = int_to_ptr.vmem [resolvable:$true] %s1742
          %1745 = dma.vmem_to_hbm [thread:$0]  %s1743, 128, %s1740, %s1729
        $region60: #{roberta_partial_encoder.1} parent=55 // pred_fallthru
          _
      $region56: #{roberta_partial_encoder.1} parent=5 // pred_fallthru
        _
      %p1746 = scmp.le.s32.totalorder 2, %s18
      // Predicated region
      $region61: #{roberta_partial_encoder.1} parent=5 // pred_check
        %p1747 = pneg %p1746
      $region62: #{roberta_partial_encoder.1} parent=5 // pred_check_branch
        %1749 = sbr.rel (%p1747) target = $region64
      $region63: #{roberta_partial_encoder.1} parent=5 // pred_region
        %s1750 = ssub.s32 %s18, 2
        // Predicated region
        $region65: #{roberta_partial_encoder.1} parent=63 // pred_check
          %p1751 = pneg %p246
        $region66: #{roberta_partial_encoder.1} parent=63 // pred_check_branch
          %1753 = sbr.rel (%p1751) target = $region68
        $region67: #{roberta_partial_encoder.1} parent=63 // pred_region
          %s1754 = sand.u32 %s231, 1
          %s1755 = scalar_lea.sflag [#allocation3], %s1754
          %s1756 = sand.u32 %s231, 1
          %s1757 = smul.addr %s1756, 8
          %s1758 = scalar_lea.vmem [#allocation2], %s1757
          %1759 = dma.done %s1755, 128
        $region68: #{roberta_partial_encoder.1} parent=63 // pred_fallthru
          _
      $region64: #{roberta_partial_encoder.1} parent=5 // pred_fallthru
        _
    $region6: #{roberta_partial_encoder.1} parent=1 // loop_footer
      %s22 = sadd.s32 1, %s18
    $region7: #{roberta_partial_encoder.1} parent=1 // loop_footer_branch
      %17 = sbr.rel target = $region3
    $region8: #{roberta_partial_encoder.1} parent=1 // loop_exit
      _
    %1760 = vsyncpa [#allocation3], 1
    %s1761 = scalar_lea.sflag [#allocation3], 1
    %1762 = vsyncpa %s1761, 1

</llo_original>
